<compile_context>
chip_gen: v6e
topology: v6e:2x2x1
jax: 0.10.0
libtpu: 0.0.40
codegen_flags: <defaults>
</compile_context>

<pallas_src>
import functools
import math

import jax
import jax.numpy as jnp
from jax.experimental import pallas as pl
from jax.experimental.pallas import tpu as pltpu


def fusion_attn_kernel(q_ref, kv_ref, wq_t_ref, bq_ref, wk_ref, wv_t_ref, *rest,
                       use_adapter, matmul_dtype, approx_recip):
    if use_adapter:
        wd_t_ref, bd_ref, wu_t_ref, bu_ref, out_ref = rest
    else:
        (out_ref,) = rest

    md = matmul_dtype
    f32 = jnp.float32
    n_adapters = kv_ref.shape[0]

    q_raw = q_ref[...]                                                   # (TM,H), streamed dtype

    # --- query projection: one (TM,H)x(H,H) matmul (weight pre-transposed) ------
    q_proj = jnp.dot(q_raw.astype(md), wq_t_ref[...],
                     preferred_element_type=f32) + bq_ref[...]           # (TM,H) f32

    # --- key path: linearity + softmax shift-invariance -------------------------
    #   score_n = q_proj . (Wk @ (kv_raw_n + q) + bk)
    #           = (q_proj @ Wk) . kv_raw_n  +  const(token)   -> const cancels.
    qk = jnp.dot(q_proj.astype(md), wk_ref[...],
                 preferred_element_type=f32)                             # (TM,H) f32

    score_cols = [
        jnp.sum(qk * kv_ref[n].astype(f32), axis=-1, keepdims=True)      # (TM,1)
        for n in range(n_adapters)
    ]
    scores = jnp.stack(score_cols, axis=0)                               # (N,TM,1)

    # Softmax over the (small, static) adapter axis: single max/exp/sum/reciprocal.
    m = jnp.max(scores, axis=0, keepdims=True)                           # (1,TM,1)
    exps = jnp.exp(scores - m)                                           # (N,TM,1)  EUP
    denom = jnp.sum(exps, axis=0)                                        # (TM,1)
    inv = pl.reciprocal(denom, approx=approx_recip)                      # (TM,1)

    # --- value path: linearity + sum(p)=1 ----------------------------------------
    #   ctx = sum_n p_n * ((kv_raw_n + q) @ Wv^T) = (sum_n p_n * kv_raw_n + q) @ Wv^T
    # Weighted kv sum on the VPU (one live (TM,H) accumulator, no (N,TM,H) temp),
    # residual added ONCE post-normalization, then ONE matmul.
    wkv = exps[0] * kv_ref[0].astype(f32)
    for n in range(1, n_adapters):
        wkv = wkv + exps[n] * kv_ref[n].astype(f32)
    wkv = wkv * inv + q_raw.astype(f32)                                  # (TM,H) f32
    ctx = jnp.dot(wkv.astype(md), wv_t_ref[...],
                  preferred_element_type=f32)                            # (TM,H) f32

    # --- optional AdapterModule: down -> exact GELU -> up (dropout = eval no-op) -
    if use_adapter:
        down = jnp.dot(ctx.astype(md), wd_t_ref[...],
                       preferred_element_type=f32) + bd_ref[...]         # (TM, BND_pad)
        act = 0.5 * down * (1.0 + jax.lax.erf(down * (1.0 / math.sqrt(2.0))))
        ctx = jnp.dot(act.astype(md), wu_t_ref[...],
                      preferred_element_type=f32) + bu_ref[...]          # (TM,H)

    out_ref[...] = ctx.astype(out_ref.dtype)


def _vmem_capacity_bytes():
    """Per-core VMEM capacity; falls back to 64 MiB (safe on every generation)."""
    try:
        return int(pltpu.get_tpu_info().vmem_capacity_bytes)
    except Exception:
        return 64 * 1024 * 1024


def _candidate_tiles(M):
    """Sublane-legal token tiles (multiples of 8 dividing M, plus M), descending."""
    cands = {M}
    cands.update(d for d in range(8, M, 8) if M % d == 0)
    return sorted(cands, reverse=True)


def fusion_attn_forward(hidden_states_before, adapters_output, params, *,
                        use_adapter_after_fusion=True,
                        token_tile=512,
                        matmul_dtype=jnp.bfloat16,
                        out_dtype=None):
    S, B, H = hidden_states_before.shape
    N = adapters_output.shape[0]
    M = S * B

    # Flatten tokens in (s,b) order: both inputs collapse with FREE reshapes, and
    # out.reshape(S,B,H) is exactly context_layer.permute(1,0,2).  Inputs stream in
    # whatever dtype the caller already holds (no wrapper-side cast pass).
    q2 = hidden_states_before.reshape(M, H)
    kv2 = adapters_output.reshape(N, M, H)

    md = jnp.dtype(matmul_dtype)
    approx_recip = md != jnp.dtype(jnp.float32)
    if out_dtype is None:
        out_dtype = hidden_states_before.dtype
    out_dtype = jnp.dtype(out_dtype)

    # Pre-transpose / pre-cast weights once in the wrapper (no in-kernel .T).
    wq_t = params["wq"].T.astype(md)      # (H,H)
    wk_c = params["wk"].astype(md)        # (H,H)  un-transposed: kernel does q_proj @ Wk
    wv_t = params["wv"].T.astype(md)      # (H,H)
    bq = params["bq"].reshape(1, H).astype(jnp.float32)
    # NOTE: bk cancels in the softmax (per-token constant) and is not passed at all.

    weight_args = [wq_t, bq, wk_c, wv_t]
    w_bytes = 3 * H * H * md.itemsize + H * 4

    bnd_pad = 0
    if use_adapter_after_fusion:
        bnd = params["wd"].shape[0]
        bnd_pad = ((bnd + 127) // 128) * 128                    # lane-dense bottleneck
        wd_t = jnp.pad(params["wd"].T, ((0, 0), (0, bnd_pad - bnd))).astype(md)
        bd = jnp.pad(params["bd"], (0, bnd_pad - bnd)).reshape(1, bnd_pad).astype(jnp.float32)
        wu_t = jnp.pad(params["wu"].T, ((0, bnd_pad - bnd), (0, 0))).astype(md)
        bu = params["bu"].reshape(1, H).astype(jnp.float32)
        weight_args += [wd_t, bd, wu_t, bu]
        w_bytes += 2 * H * bnd_pad * md.itemsize + (bnd_pad + H) * 4

    q_isz = jnp.dtype(q2.dtype).itemsize
    kv_isz = jnp.dtype(kv2.dtype).itemsize
    o_isz = out_dtype.itemsize

    def est_bytes(tm):
        io = 2 * tm * H * (q_isz + o_isz) + 2 * N * tm * H * kv_isz   # double-buffered I/O blocks
        interm = 6 * tm * H * 4 + 4 * N * tm * 4                      # f32 in-kernel temporaries
        if use_adapter_after_fusion:
            interm += 2 * tm * bnd_pad * 4
        return io + 2 * w_bytes + interm                              # weights counted 2x (conservative)

    # Generation-aware tile choice: largest legal tile that (a) respects token_tile,
    # (b) leaves >= 2 grid steps when possible (so "parallel" shards across v7x's two
    # TensorCores), and (c) fits VMEM minus headroom.  Shrink tm instead of handing
    # the compiler a limit below the actual footprint.
    cap = _vmem_capacity_bytes()
    budget = max(cap - (16 << 20), 8 << 20)
    cands = _candidate_tiles(M)
    pref = [t for t in cands if t <= token_tile and M // t >= 2]
    order = pref + [t for t in cands if t not in pref]
    tm = None
    for t in order:
        if est_bytes(t) <= budget:
            tm = t
            break
    if tm is None:
        tm = cands[-1]
    vmem_limit = int(min(cap - (4 << 20), max(est_bytes(tm) + (8 << 20), 32 << 20)))

    kernel = functools.partial(
        fusion_attn_kernel,
        use_adapter=use_adapter_after_fusion,
        matmul_dtype=md,
        approx_recip=approx_recip)

    def rep(shape, single_buffer):
        """Grid-constant (replicated) full-array block."""
        nd = len(shape)
        idx = lambda i, _nd=nd: (0,) * _nd
        if single_buffer:
            # Block index never changes -> single-buffer to halve the VMEM footprint.
            return pl.BlockSpec(shape, idx, pipeline_mode=pl.Buffered(1))
        return pl.BlockSpec(shape, idx)

    def build_and_run(single_buffer_weights):
        in_specs = [
            pl.BlockSpec((tm, H), lambda i: (i, 0)),         # q / residual tokens
            pl.BlockSpec((N, tm, H), lambda i: (0, i, 0)),   # adapter outputs (key == value)
            rep((H, H), single_buffer_weights),              # Wq^T
            rep((1, H), single_buffer_weights),              # bq
            rep((H, H), single_buffer_weights),              # Wk (un-transposed)
            rep((H, H), single_buffer_weights),              # Wv^T
        ]
        if use_adapter_after_fusion:
            in_specs += [
                rep((H, bnd_pad), single_buffer_weights),    # adapter down  Wd^T (padded)
                rep((1, bnd_pad), single_buffer_weights),    # bd (padded)
                rep((bnd_pad, H), single_buffer_weights),    # adapter up    Wu^T (padded)
                rep((1, H), single_buffer_weights),          # bu
            ]
        return pl.pallas_call(
            kernel,
            out_shape=jax.ShapeDtypeStruct((M, H), out_dtype),
            grid=(M // tm,),
            in_specs=in_specs,
            out_specs=pl.BlockSpec((tm, H), lambda i: (i, 0)),
            compiler_params=pltpu.CompilerParams(
                dimension_semantics=("parallel",),
                vmem_limit_bytes=vmem_limit),
        )(q2, kv2, *weight_args)

    try:
        out = build_and_run(True)
    except Exception:
        # pl.Buffered(1) single-buffering not available on this jax version/backend:
        # fall back to default double-buffered weight blocks (correctness unchanged).
        out = build_and_run(False)

    return out.reshape(S, B, H)


def fusion_attn_reference(hidden_states_before, adapters_output, params,
                          use_adapter_after_fusion=True):
    """Pure-JAX reference mirroring the PyTorch forward (eval mode, T=1)."""
    hp = jax.lax.Precision.HIGHEST
    q = jnp.transpose(hidden_states_before, (1, 0, 2))                     # (B,S,H)
    kv = jnp.transpose(adapters_output, (2, 1, 0, 3)) + q[:, :, None, :]   # (B,S,N,H)
    Q = jnp.matmul(q, params["wq"].T, precision=hp) + params["bq"]
    K = jnp.einsum("bsnh,oh->bsno", kv, params["wk"], precision=hp) + params["bk"]
    V = jnp.einsum("bsnh,oh->bsno", kv, params["wv"], precision=hp)
    scores = jnp.einsum("bsh,bsnh->bsn", Q, K, precision=hp)
    probs = jax.nn.softmax(scores, axis=-1)
    ctx = jnp.einsum("bsn,bsnh->bsh", probs, V, precision=hp)
    ctx = jnp.transpose(ctx, (1, 0, 2))                                    # (S,B,H)
    if use_adapter_after_fusion:
        d = jnp.matmul(ctx, params["wd"].T, precision=hp) + params["bd"]
        d = jax.nn.gelu(d, approximate=False)
        ctx = jnp.matmul(d, params["wu"].T, precision=hp) + params["bu"]
    return ctx


def init_params(key, hidden, bottleneck):
    """Deterministic init matching PyTorch nn.Linear shapes (W: (out, in))."""
    def linear(k, out_f, in_f, bias=True):
        kw, kb = jax.random.split(k)
        bound = 1.0 / math.sqrt(in_f)
        w = jax.random.uniform(kw, (out_f, in_f), jnp.float32, -bound, bound)
        if bias:
            b = jax.random.uniform(kb, (out_f,), jnp.float32, -bound, bound)
            return w, b
        return w, None

    ks = jax.random.split(key, 5)
    wq, bq = linear(ks[0], hidden, hidden)
    wk, bk = linear(ks[1], hidden, hidden)
    wv, _ = linear(ks[2], hidden, hidden, bias=False)
    wd, bd = linear(ks[3], bottleneck, hidden)   # adapter down_project
    wu, bu = linear(ks[4], hidden, bottleneck)   # adapter up_project
    # NOTE: `self.dense` (hidden -> 1) is unused in forward, so it is omitted.
    return dict(wq=wq, bq=bq, wk=wk, bk=bk, wv=wv, wd=wd, bd=bd, wu=wu, bu=bu)


if __name__ == "__main__":
    S, B, H, N, BND = 8, 2, 32, 4, 16   # seq, batch, hidden, num_adapters, bottleneck
    key = jax.random.PRNGKey(0)
    k1, k2, k3 = jax.random.split(key, 3)
    hidden_states_before = jax.random.normal(k1, (S, B, H), jnp.float32)
    adapters_output = jax.random.normal(k2, (N, S, B, H), jnp.float32)
    params = init_params(k3, H, BND)

    ref = fusion_attn_reference(hidden_states_before, adapters_output, params, True)
    ref_na = fusion_attn_reference(hidden_states_before, adapters_output, params, False)

    # fp32-MXU path (tighter check; the softmax-shift / linearity rewrite only
    # reassociates sums, so differences are pure floating-point rounding).
    out_f32 = jax.block_until_ready(
        fusion_attn_forward(hidden_states_before, adapters_output, params,
                            use_adapter_after_fusion=True,
                            matmul_dtype=jnp.float32))
    assert out_f32.shape == (S, B, H)
    if not jnp.allclose(out_f32, ref, atol=2e-2, rtol=2e-2):
        raise AssertionError(
            "fp32 Pallas kernel mismatch vs reference, max abs diff = "
            f"{float(jnp.max(jnp.abs(out_f32 - ref)))}")

    # No-adapter branch (exercises the reduced-argument kernel signature).
    out_na = jax.block_until_ready(
        fusion_attn_forward(hidden_states_before, adapters_output, params,
                            use_adapter_after_fusion=False,
                            matmul_dtype=jnp.float32))
    assert out_na.shape == (S, B, H)
    if not jnp.allclose(out_na, ref_na, atol=2e-2, rtol=2e-2):
        raise AssertionError(
            "fp32 Pallas kernel (no adapter) mismatch vs reference, max abs diff = "
            f"{float(jnp.max(jnp.abs(out_na - ref_na)))}")

    # Default bf16-MXU path (performance configuration), looser tolerance.
    out_bf16 = jax.block_until_ready(
        fusion_attn_forward(hidden_states_before, adapters_output, params,
                            use_adapter_after_fusion=True))
    assert out_bf16.shape == (S, B, H)
    if not jnp.allclose(out_bf16, ref, atol=1e-1, rtol=1e-1):
        raise AssertionError(
            "bf16 Pallas kernel mismatch vs reference, max abs diff = "
            f"{float(jnp.max(jnp.abs(out_bf16 - ref)))}")

    print("KERNEL_OK")
</pallas_src>

<mosaic_0001>
module attributes {stable_mosaic.version = 11 : i64} {
  func.func @fusion_attn_kernel(%arg0: i32, %arg1: memref<8x32xf32, #tpu.memory_space<vmem>>, %arg2: memref<4x8x32xf32, #tpu.memory_space<vmem>>, %arg3: memref<32x32xf32, #tpu.memory_space<vmem>>, %arg4: memref<1x32xf32, #tpu.memory_space<vmem>>, %arg5: memref<32x32xf32, #tpu.memory_space<vmem>>, %arg6: memref<32x32xf32, #tpu.memory_space<vmem>>, %arg7: memref<32x128xf32, #tpu.memory_space<vmem>>, %arg8: memref<1x128xf32, #tpu.memory_space<vmem>>, %arg9: memref<128x32xf32, #tpu.memory_space<vmem>>, %arg10: memref<1x32xf32, #tpu.memory_space<vmem>>, %arg11: memref<8x32xf32, #tpu.memory_space<vmem>>) attributes {dimension_semantics = [#tpu.dimension_semantics<parallel>], iteration_bounds = array<i64: 2>, scalar_prefetch = 0 : i64, scratch_operands = 0 : i64, tpu.core_type = #tpu.core_type<tc>, window_params = [{transform_indices = @transform_0, window_bounds = array<i64: 8, 32>}, {transform_indices = @transform_1, window_bounds = array<i64: 4, 8, 32>}, {pipeline_mode = #tpu.pipeline_mode<synchronous>, transform_indices = @transform_2, window_bounds = array<i64: 32, 32>}, {pipeline_mode = #tpu.pipeline_mode<synchronous>, transform_indices = @transform_3, window_bounds = array<i64: 1, 32>}, {pipeline_mode = #tpu.pipeline_mode<synchronous>, transform_indices = @transform_4, window_bounds = array<i64: 32, 32>}, {pipeline_mode = #tpu.pipeline_mode<synchronous>, transform_indices = @transform_5, window_bounds = array<i64: 32, 32>}, {pipeline_mode = #tpu.pipeline_mode<synchronous>, transform_indices = @transform_6, window_bounds = array<i64: 32, 128>}, {pipeline_mode = #tpu.pipeline_mode<synchronous>, transform_indices = @transform_7, window_bounds = array<i64: 1, 128>}, {pipeline_mode = #tpu.pipeline_mode<synchronous>, transform_indices = @transform_8, window_bounds = array<i64: 128, 32>}, {pipeline_mode = #tpu.pipeline_mode<synchronous>, transform_indices = @transform_9, window_bounds = array<i64: 1, 32>}, {transform_indices = @transform_10, window_bounds = array<i64: 8, 32>}]} {
    %c0 = arith.constant 0 : index
    %c0_0 = arith.constant 0 : index
    %0 = vector.load %arg1[%c0, %c0_0] : memref<8x32xf32, #tpu.memory_space<vmem>>, vector<8x32xf32>
    %c0_1 = arith.constant 0 : index
    %c0_2 = arith.constant 0 : index
    %1 = vector.load %arg3[%c0_1, %c0_2] : memref<32x32xf32, #tpu.memory_space<vmem>>, vector<32x32xf32>
    %cst = arith.constant dense<0.000000e+00> : vector<8x32xf32>
    %2 = tpu.matmul %0, %1, %cst {dimension_numbers = #tpu.dot_dimension_numbers<[1], [0], [0], [1], [0, 0, 1, 1], [], []>} : vector<8x32xf32>, vector<32x32xf32>, vector<8x32xf32> -> vector<8x32xf32>
    %c0_3 = arith.constant 0 : index
    %c0_4 = arith.constant 0 : index
    %3 = vector.load %arg4[%c0_3, %c0_4] : memref<1x32xf32, #tpu.memory_space<vmem>>, vector<1x32xf32>
    %4 = vector.broadcast %3 : vector<1x32xf32> to vector<8x32xf32>
    %5 = arith.addf %2, %4 : vector<8x32xf32>
    %c0_5 = arith.constant 0 : index
    %c0_6 = arith.constant 0 : index
    %6 = vector.load %arg5[%c0_5, %c0_6] : memref<32x32xf32, #tpu.memory_space<vmem>>, vector<32x32xf32>
    %cst_7 = arith.constant dense<0.000000e+00> : vector<8x32xf32>
    %7 = tpu.matmul %5, %6, %cst_7 {dimension_numbers = #tpu.dot_dimension_numbers<[1], [0], [0], [1], [0, 0, 1, 1], [], []>} : vector<8x32xf32>, vector<32x32xf32>, vector<8x32xf32> -> vector<8x32xf32>
    %c0_8 = arith.constant 0 : index
    %c0_9 = arith.constant 0 : index
    %c0_10 = arith.constant 0 : index
    %8 = vector.load %arg2[%c0_8, %c0_9, %c0_10] : memref<4x8x32xf32, #tpu.memory_space<vmem>>, vector<1x8x32xf32>
    %9 = vector.shape_cast %8 : vector<1x8x32xf32> to vector<8x32xf32>
    %10 = arith.mulf %7, %9 : vector<8x32xf32>
    %cst_11 = arith.constant dense<0.000000e+00> : vector<8xf32>
    %11 = vector.multi_reduction <add>, %10, %cst_11 [1] : vector<8x32xf32> to vector<8xf32>
    %12 = vector.shape_cast %11 : vector<8xf32> to vector<8x1xf32>
    %c1 = arith.constant 1 : index
    %c0_12 = arith.constant 0 : index
    %c0_13 = arith.constant 0 : index
    %13 = vector.load %arg2[%c1, %c0_12, %c0_13] : memref<4x8x32xf32, #tpu.memory_space<vmem>>, vector<1x8x32xf32>
    %14 = vector.shape_cast %13 : vector<1x8x32xf32> to vector<8x32xf32>
    %15 = arith.mulf %7, %14 : vector<8x32xf32>
    %cst_14 = arith.constant dense<0.000000e+00> : vector<8xf32>
    %16 = vector.multi_reduction <add>, %15, %cst_14 [1] : vector<8x32xf32> to vector<8xf32>
    %17 = vector.shape_cast %16 : vector<8xf32> to vector<8x1xf32>
    %c2 = arith.constant 2 : index
    %c0_15 = arith.constant 0 : index
    %c0_16 = arith.constant 0 : index
    %18 = vector.load %arg2[%c2, %c0_15, %c0_16] : memref<4x8x32xf32, #tpu.memory_space<vmem>>, vector<1x8x32xf32>
    %19 = vector.shape_cast %18 : vector<1x8x32xf32> to vector<8x32xf32>
    %20 = arith.mulf %7, %19 : vector<8x32xf32>
    %cst_17 = arith.constant dense<0.000000e+00> : vector<8xf32>
    %21 = vector.multi_reduction <add>, %20, %cst_17 [1] : vector<8x32xf32> to vector<8xf32>
    %22 = vector.shape_cast %21 : vector<8xf32> to vector<8x1xf32>
    %c3 = arith.constant 3 : index
    %c0_18 = arith.constant 0 : index
    %c0_19 = arith.constant 0 : index
    %23 = vector.load %arg2[%c3, %c0_18, %c0_19] : memref<4x8x32xf32, #tpu.memory_space<vmem>>, vector<1x8x32xf32>
    %24 = vector.shape_cast %23 : vector<1x8x32xf32> to vector<8x32xf32>
    %25 = arith.mulf %7, %24 : vector<8x32xf32>
    %cst_20 = arith.constant dense<0.000000e+00> : vector<8xf32>
    %26 = vector.multi_reduction <add>, %25, %cst_20 [1] : vector<8x32xf32> to vector<8xf32>
    %27 = vector.shape_cast %26 : vector<8xf32> to vector<8x1xf32>
    %28 = vector.shape_cast %12 : vector<8x1xf32> to vector<1x8x1xf32>
    %29 = vector.shape_cast %17 : vector<8x1xf32> to vector<1x8x1xf32>
    %30 = vector.shape_cast %22 : vector<8x1xf32> to vector<1x8x1xf32>
    %31 = vector.shape_cast %27 : vector<8x1xf32> to vector<1x8x1xf32>
    %32 = tpu.concatenate %28, %29, %30, %31 in 0 : vector<1x8x1xf32>, vector<1x8x1xf32>, vector<1x8x1xf32>, vector<1x8x1xf32> -> vector<4x8x1xf32>
    %cst_21 = arith.constant dense<0xFF800000> : vector<8x1xf32>
    %33 = vector.multi_reduction <maximumf>, %32, %cst_21 [0] : vector<4x8x1xf32> to vector<8x1xf32>
    %34 = vector.shape_cast %33 : vector<8x1xf32> to vector<1x8x1xf32>
    %35 = vector.broadcast %34 : vector<1x8x1xf32> to vector<4x8x1xf32>
    %36 = arith.subf %32, %35 : vector<4x8x1xf32>
    %37 = math.exp %36 : vector<4x8x1xf32>
    %cst_22 = arith.constant dense<0.000000e+00> : vector<8x1xf32>
    %38 = vector.multi_reduction <add>, %37, %cst_22 [0] : vector<4x8x1xf32> to vector<8x1xf32>
    %39 = tpu.reciprocal %38 : vector<8x1xf32> -> vector<8x1xf32>
    %40 = vector.extract_strided_slice %37 {offsets = [0, 0, 0], sizes = [1, 8, 1], strides = [1, 1, 1]} : vector<4x8x1xf32> to vector<1x8x1xf32>
    %41 = vector.shape_cast %40 : vector<1x8x1xf32> to vector<8x1xf32>
    %c0_23 = arith.constant 0 : index
    %c0_24 = arith.constant 0 : index
    %c0_25 = arith.constant 0 : index
    %42 = vector.load %arg2[%c0_23, %c0_24, %c0_25] : memref<4x8x32xf32, #tpu.memory_space<vmem>>, vector<1x8x32xf32>
    %43 = vector.shape_cast %42 : vector<1x8x32xf32> to vector<8x32xf32>
    %44 = vector.broadcast %41 : vector<8x1xf32> to vector<8x32xf32>
    %45 = arith.mulf %44, %43 : vector<8x32xf32>
    %46 = vector.extract_strided_slice %37 {offsets = [1, 0, 0], sizes = [1, 8, 1], strides = [1, 1, 1]} : vector<4x8x1xf32> to vector<1x8x1xf32>
    %47 = vector.shape_cast %46 : vector<1x8x1xf32> to vector<8x1xf32>
    %c1_26 = arith.constant 1 : index
    %c0_27 = arith.constant 0 : index
    %c0_28 = arith.constant 0 : index
    %48 = vector.load %arg2[%c1_26, %c0_27, %c0_28] : memref<4x8x32xf32, #tpu.memory_space<vmem>>, vector<1x8x32xf32>
    %49 = vector.shape_cast %48 : vector<1x8x32xf32> to vector<8x32xf32>
    %50 = vector.broadcast %47 : vector<8x1xf32> to vector<8x32xf32>
    %51 = arith.mulf %50, %49 : vector<8x32xf32>
    %52 = arith.addf %45, %51 : vector<8x32xf32>
    %53 = vector.extract_strided_slice %37 {offsets = [2, 0, 0], sizes = [1, 8, 1], strides = [1, 1, 1]} : vector<4x8x1xf32> to vector<1x8x1xf32>
    %54 = vector.shape_cast %53 : vector<1x8x1xf32> to vector<8x1xf32>
    %c2_29 = arith.constant 2 : index
    %c0_30 = arith.constant 0 : index
    %c0_31 = arith.constant 0 : index
    %55 = vector.load %arg2[%c2_29, %c0_30, %c0_31] : memref<4x8x32xf32, #tpu.memory_space<vmem>>, vector<1x8x32xf32>
    %56 = vector.shape_cast %55 : vector<1x8x32xf32> to vector<8x32xf32>
    %57 = vector.broadcast %54 : vector<8x1xf32> to vector<8x32xf32>
    %58 = arith.mulf %57, %56 : vector<8x32xf32>
    %59 = arith.addf %52, %58 : vector<8x32xf32>
    %60 = vector.extract_strided_slice %37 {offsets = [3, 0, 0], sizes = [1, 8, 1], strides = [1, 1, 1]} : vector<4x8x1xf32> to vector<1x8x1xf32>
    %61 = vector.shape_cast %60 : vector<1x8x1xf32> to vector<8x1xf32>
    %c3_32 = arith.constant 3 : index
    %c0_33 = arith.constant 0 : index
    %c0_34 = arith.constant 0 : index
    %62 = vector.load %arg2[%c3_32, %c0_33, %c0_34] : memref<4x8x32xf32, #tpu.memory_space<vmem>>, vector<1x8x32xf32>
    %63 = vector.shape_cast %62 : vector<1x8x32xf32> to vector<8x32xf32>
    %64 = vector.broadcast %61 : vector<8x1xf32> to vector<8x32xf32>
    %65 = arith.mulf %64, %63 : vector<8x32xf32>
    %66 = arith.addf %59, %65 : vector<8x32xf32>
    %67 = vector.broadcast %39 : vector<8x1xf32> to vector<8x32xf32>
    %68 = arith.mulf %66, %67 : vector<8x32xf32>
    %69 = arith.addf %68, %0 : vector<8x32xf32>
    %c0_35 = arith.constant 0 : index
    %c0_36 = arith.constant 0 : index
    %70 = vector.load %arg6[%c0_35, %c0_36] : memref<32x32xf32, #tpu.memory_space<vmem>>, vector<32x32xf32>
    %cst_37 = arith.constant dense<0.000000e+00> : vector<8x32xf32>
    %71 = tpu.matmul %69, %70, %cst_37 {dimension_numbers = #tpu.dot_dimension_numbers<[1], [0], [0], [1], [0, 0, 1, 1], [], []>} : vector<8x32xf32>, vector<32x32xf32>, vector<8x32xf32> -> vector<8x32xf32>
    %c0_38 = arith.constant 0 : index
    %c0_39 = arith.constant 0 : index
    %72 = vector.load %arg7[%c0_38, %c0_39] : memref<32x128xf32, #tpu.memory_space<vmem>>, vector<32x128xf32>
    %cst_40 = arith.constant dense<0.000000e+00> : vector<8x128xf32>
    %73 = tpu.matmul %71, %72, %cst_40 {dimension_numbers = #tpu.dot_dimension_numbers<[1], [0], [0], [1], [0, 0, 1, 1], [], []>} : vector<8x32xf32>, vector<32x128xf32>, vector<8x128xf32> -> vector<8x128xf32>
    %c0_41 = arith.constant 0 : index
    %c0_42 = arith.constant 0 : index
    %74 = vector.load %arg8[%c0_41, %c0_42] : memref<1x128xf32, #tpu.memory_space<vmem>>, vector<1x128xf32>
    %75 = vector.broadcast %74 : vector<1x128xf32> to vector<8x128xf32>
    %76 = arith.addf %73, %75 : vector<8x128xf32>
    %cst_43 = arith.constant 5.000000e-01 : f32
    %77 = vector.broadcast %cst_43 : f32 to vector<8x128xf32>
    %78 = arith.mulf %77, %76 : vector<8x128xf32>
    %cst_44 = arith.constant 0.707106769 : f32
    %79 = vector.broadcast %cst_44 : f32 to vector<8x128xf32>
    %80 = arith.mulf %76, %79 : vector<8x128xf32>
    %81 = math.erf %80 : vector<8x128xf32>
    %cst_45 = arith.constant 1.000000e+00 : f32
    %82 = vector.broadcast %cst_45 : f32 to vector<8x128xf32>
    %83 = arith.addf %82, %81 : vector<8x128xf32>
    %84 = arith.mulf %78, %83 : vector<8x128xf32>
    %c0_46 = arith.constant 0 : index
    %c0_47 = arith.constant 0 : index
    %85 = vector.load %arg9[%c0_46, %c0_47] : memref<128x32xf32, #tpu.memory_space<vmem>>, vector<128x32xf32>
    %cst_48 = arith.constant dense<0.000000e+00> : vector<8x32xf32>
    %86 = tpu.matmul %84, %85, %cst_48 {dimension_numbers = #tpu.dot_dimension_numbers<[1], [0], [0], [1], [0, 0, 1, 1], [], []>} : vector<8x128xf32>, vector<128x32xf32>, vector<8x32xf32> -> vector<8x32xf32>
    %c0_49 = arith.constant 0 : index
    %c0_50 = arith.constant 0 : index
    %87 = vector.load %arg10[%c0_49, %c0_50] : memref<1x32xf32, #tpu.memory_space<vmem>>, vector<1x32xf32>
    %88 = vector.broadcast %87 : vector<1x32xf32> to vector<8x32xf32>
    %89 = arith.addf %86, %88 : vector<8x32xf32>
    %c0_51 = arith.constant 0 : index
    %c0_52 = arith.constant 0 : index
    %90 = vector.load %arg11[%c0_51, %c0_52] : memref<8x32xf32, #tpu.memory_space<vmem>>, vector<8x32xf32>
    tpu.vector_store %arg11[%c0_51, %c0_52], %89 {strides = array<i32>} : memref<8x32xf32, #tpu.memory_space<vmem>>, vector<8x32xf32>,
    return
  }
  func.func @transform_0(%arg0: i32) -> (i32, i32) {
    %c0_i32 = arith.constant 0 : i32
    %c0_i32_0 = arith.constant 0 : i32
    return %arg0, %c0_i32 : i32, i32
  }
  func.func @transform_1(%arg0: i32) -> (i32, i32, i32) {
    %c0_i32 = arith.constant 0 : i32
    %c0_i32_0 = arith.constant 0 : i32
    %c0_i32_1 = arith.constant 0 : i32
    return %c0_i32, %arg0, %c0_i32_0 : i32, i32, i32
  }
  func.func @transform_2(%arg0: i32) -> (i32, i32) {
    %c0_i32 = arith.constant 0 : i32
    %c0_i32_0 = arith.constant 0 : i32
    %c0_i32_1 = arith.constant 0 : i32
    return %c0_i32, %c0_i32_0 : i32, i32
  }
  func.func @transform_3(%arg0: i32) -> (i32, i32) {
    %c0_i32 = arith.constant 0 : i32
    %c0_i32_0 = arith.constant 0 : i32
    %c0_i32_1 = arith.constant 0 : i32
    return %c0_i32, %c0_i32_0 : i32, i32
  }
  func.func @transform_4(%arg0: i32) -> (i32, i32) {
    %c0_i32 = arith.constant 0 : i32
    %c0_i32_0 = arith.constant 0 : i32
    %c0_i32_1 = arith.constant 0 : i32
    return %c0_i32, %c0_i32_0 : i32, i32
  }
  func.func @transform_5(%arg0: i32) -> (i32, i32) {
    %c0_i32 = arith.constant 0 : i32
    %c0_i32_0 = arith.constant 0 : i32
    %c0_i32_1 = arith.constant 0 : i32
    return %c0_i32, %c0_i32_0 : i32, i32
  }
  func.func @transform_6(%arg0: i32) -> (i32, i32) {
    %c0_i32 = arith.constant 0 : i32
    %c0_i32_0 = arith.constant 0 : i32
    %c0_i32_1 = arith.constant 0 : i32
    return %c0_i32, %c0_i32_0 : i32, i32
  }
  func.func @transform_7(%arg0: i32) -> (i32, i32) {
    %c0_i32 = arith.constant 0 : i32
    %c0_i32_0 = arith.constant 0 : i32
    %c0_i32_1 = arith.constant 0 : i32
    return %c0_i32, %c0_i32_0 : i32, i32
  }
  func.func @transform_8(%arg0: i32) -> (i32, i32) {
    %c0_i32 = arith.constant 0 : i32
    %c0_i32_0 = arith.constant 0 : i32
    %c0_i32_1 = arith.constant 0 : i32
    return %c0_i32, %c0_i32_0 : i32, i32
  }
  func.func @transform_9(%arg0: i32) -> (i32, i32) {
    %c0_i32 = arith.constant 0 : i32
    %c0_i32_0 = arith.constant 0 : i32
    %c0_i32_1 = arith.constant 0 : i32
    return %c0_i32, %c0_i32_0 : i32, i32
  }
  func.func @transform_10(%arg0: i32) -> (i32, i32) {
    %c0_i32 = arith.constant 0 : i32
    %c0_i32_0 = arith.constant 0 : i32
    return %arg0, %c0_i32 : i32, i32
  }
}

module attributes {stable_mosaic.version = 11 : i64} {
  func.func @fusion_attn_kernel(%arg0: i32, %arg1: memref<8x32xf32, #tpu.memory_space<vmem>>, %arg2: memref<4x8x32xf32, #tpu.memory_space<vmem>>, %arg3: memref<32x32xf32, #tpu.memory_space<vmem>>, %arg4: memref<1x32xf32, #tpu.memory_space<vmem>>, %arg5: memref<32x32xf32, #tpu.memory_space<vmem>>, %arg6: memref<32x32xf32, #tpu.memory_space<vmem>>, %arg7: memref<32x128xf32, #tpu.memory_space<vmem>>, %arg8: memref<1x128xf32, #tpu.memory_space<vmem>>, %arg9: memref<128x32xf32, #tpu.memory_space<vmem>>, %arg10: memref<1x32xf32, #tpu.memory_space<vmem>>, %arg11: memref<8x32xf32, #tpu.memory_space<vmem>>) attributes {dimension_semantics = [#tpu.dimension_semantics<parallel>], iteration_bounds = array<i64: 2>, scalar_prefetch = 0 : i64, scratch_operands = 0 : i64, tpu.core_type = #tpu.core_type<tc>, window_params = [{transform_indices = @transform_0, window_bounds = array<i64: 8, 32>}, {transform_indices = @transform_1, window_bounds = array<i64: 4, 8, 32>}, {pipeline_mode = #tpu.pipeline_mode<synchronous>, transform_indices = @transform_2, window_bounds = array<i64: 32, 32>}, {pipeline_mode = #tpu.pipeline_mode<synchronous>, transform_indices = @transform_3, window_bounds = array<i64: 1, 32>}, {pipeline_mode = #tpu.pipeline_mode<synchronous>, transform_indices = @transform_4, window_bounds = array<i64: 32, 32>}, {pipeline_mode = #tpu.pipeline_mode<synchronous>, transform_indices = @transform_5, window_bounds = array<i64: 32, 32>}, {pipeline_mode = #tpu.pipeline_mode<synchronous>, transform_indices = @transform_6, window_bounds = array<i64: 32, 128>}, {pipeline_mode = #tpu.pipeline_mode<synchronous>, transform_indices = @transform_7, window_bounds = array<i64: 1, 128>}, {pipeline_mode = #tpu.pipeline_mode<synchronous>, transform_indices = @transform_8, window_bounds = array<i64: 128, 32>}, {pipeline_mode = #tpu.pipeline_mode<synchronous>, transform_indices = @transform_9, window_bounds = array<i64: 1, 32>}, {transform_indices = @transform_10, window_bounds = array<i64: 8, 32>}]} {
    %c0 = arith.constant 0 : index
    %c0_0 = arith.constant 0 : index
    %0 = vector.load %arg1[%c0, %c0_0] : memref<8x32xf32, #tpu.memory_space<vmem>>, vector<8x32xf32>
    %c0_1 = arith.constant 0 : index
    %c0_2 = arith.constant 0 : index
    %1 = vector.load %arg3[%c0_1, %c0_2] : memref<32x32xf32, #tpu.memory_space<vmem>>, vector<32x32xf32>
    %cst = arith.constant dense<0.000000e+00> : vector<8x32xf32>
    %2 = tpu.matmul %0, %1, %cst {dimension_numbers = #tpu.dot_dimension_numbers<[1], [0], [0], [1], [0, 0, 1, 1], [], []>} : vector<8x32xf32>, vector<32x32xf32>, vector<8x32xf32> -> vector<8x32xf32>
    %c0_3 = arith.constant 0 : index
    %c0_4 = arith.constant 0 : index
    %3 = vector.load %arg4[%c0_3, %c0_4] : memref<1x32xf32, #tpu.memory_space<vmem>>, vector<1x32xf32>
    %4 = vector.broadcast %3 : vector<1x32xf32> to vector<8x32xf32>
    %5 = arith.addf %2, %4 : vector<8x32xf32>
    %c0_5 = arith.constant 0 : index
    %c0_6 = arith.constant 0 : index
    %6 = vector.load %arg5[%c0_5, %c0_6] : memref<32x32xf32, #tpu.memory_space<vmem>>, vector<32x32xf32>
    %cst_7 = arith.constant dense<0.000000e+00> : vector<8x32xf32>
    %7 = tpu.matmul %5, %6, %cst_7 {dimension_numbers = #tpu.dot_dimension_numbers<[1], [0], [0], [1], [0, 0, 1, 1], [], []>} : vector<8x32xf32>, vector<32x32xf32>, vector<8x32xf32> -> vector<8x32xf32>
    %c0_8 = arith.constant 0 : index
    %c0_9 = arith.constant 0 : index
    %c0_10 = arith.constant 0 : index
    %8 = vector.load %arg2[%c0_8, %c0_9, %c0_10] : memref<4x8x32xf32, #tpu.memory_space<vmem>>, vector<1x8x32xf32>
    %9 = vector.shape_cast %8 : vector<1x8x32xf32> to vector<8x32xf32>
    %10 = arith.mulf %7, %9 : vector<8x32xf32>
    %cst_11 = arith.constant dense<0.000000e+00> : vector<8xf32>
    %11 = vector.multi_reduction <add>, %10, %cst_11 [1] : vector<8x32xf32> to vector<8xf32>
    %12 = vector.shape_cast %11 : vector<8xf32> to vector<8x1xf32>
    %c1 = arith.constant 1 : index
    %c0_12 = arith.constant 0 : index
    %c0_13 = arith.constant 0 : index
    %13 = vector.load %arg2[%c1, %c0_12, %c0_13] : memref<4x8x32xf32, #tpu.memory_space<vmem>>, vector<1x8x32xf32>
    %14 = vector.shape_cast %13 : vector<1x8x32xf32> to vector<8x32xf32>
    %15 = arith.mulf %7, %14 : vector<8x32xf32>
    %cst_14 = arith.constant dense<0.000000e+00> : vector<8xf32>
    %16 = vector.multi_reduction <add>, %15, %cst_14 [1] : vector<8x32xf32> to vector<8xf32>
    %17 = vector.shape_cast %16 : vector<8xf32> to vector<8x1xf32>
    %c2 = arith.constant 2 : index
    %c0_15 = arith.constant 0 : index
    %c0_16 = arith.constant 0 : index
    %18 = vector.load %arg2[%c2, %c0_15, %c0_16] : memref<4x8x32xf32, #tpu.memory_space<vmem>>, vector<1x8x32xf32>
    %19 = vector.shape_cast %18 : vector<1x8x32xf32> to vector<8x32xf32>
    %20 = arith.mulf %7, %19 : vector<8x32xf32>
    %cst_17 = arith.constant dense<0.000000e+00> : vector<8xf32>
    %21 = vector.multi_reduction <add>, %20, %cst_17 [1] : vector<8x32xf32> to vector<8xf32>
    %22 = vector.shape_cast %21 : vector<8xf32> to vector<8x1xf32>
    %c3 = arith.constant 3 : index
    %c0_18 = arith.constant 0 : index
    %c0_19 = arith.constant 0 : index
    %23 = vector.load %arg2[%c3, %c0_18, %c0_19] : memref<4x8x32xf32, #tpu.memory_space<vmem>>, vector<1x8x32xf32>
    %24 = vector.shape_cast %23 : vector<1x8x32xf32> to vector<8x32xf32>
    %25 = arith.mulf %7, %24 : vector<8x32xf32>
    %cst_20 = arith.constant dense<0.000000e+00> : vector<8xf32>
    %26 = vector.multi_reduction <add>, %25, %cst_20 [1] : vector<8x32xf32> to vector<8xf32>
    %27 = vector.shape_cast %26 : vector<8xf32> to vector<8x1xf32>
    %28 = vector.shape_cast %12 : vector<8x1xf32> to vector<1x8x1xf32>
    %29 = vector.shape_cast %17 : vector<8x1xf32> to vector<1x8x1xf32>
    %30 = vector.shape_cast %22 : vector<8x1xf32> to vector<1x8x1xf32>
    %31 = vector.shape_cast %27 : vector<8x1xf32> to vector<1x8x1xf32>
    %32 = tpu.concatenate %28, %29, %30, %31 in 0 : vector<1x8x1xf32>, vector<1x8x1xf32>, vector<1x8x1xf32>, vector<1x8x1xf32> -> vector<4x8x1xf32>
    %cst_21 = arith.constant dense<0xFF800000> : vector<8x1xf32>
    %33 = vector.multi_reduction <maximumf>, %32, %cst_21 [0] : vector<4x8x1xf32> to vector<8x1xf32>
    %34 = vector.shape_cast %33 : vector<8x1xf32> to vector<1x8x1xf32>
    %35 = vector.broadcast %34 : vector<1x8x1xf32> to vector<4x8x1xf32>
    %36 = arith.subf %32, %35 : vector<4x8x1xf32>
    %37 = math.exp %36 : vector<4x8x1xf32>
    %cst_22 = arith.constant dense<0.000000e+00> : vector<8x1xf32>
    %38 = vector.multi_reduction <add>, %37, %cst_22 [0] : vector<4x8x1xf32> to vector<8x1xf32>
    %39 = tpu.reciprocal %38 : vector<8x1xf32> -> vector<8x1xf32>
    %40 = vector.extract_strided_slice %37 {offsets = [0, 0, 0], sizes = [1, 8, 1], strides = [1, 1, 1]} : vector<4x8x1xf32> to vector<1x8x1xf32>
    %41 = vector.shape_cast %40 : vector<1x8x1xf32> to vector<8x1xf32>
    %c0_23 = arith.constant 0 : index
    %c0_24 = arith.constant 0 : index
    %c0_25 = arith.constant 0 : index
    %42 = vector.load %arg2[%c0_23, %c0_24, %c0_25] : memref<4x8x32xf32, #tpu.memory_space<vmem>>, vector<1x8x32xf32>
    %43 = vector.shape_cast %42 : vector<1x8x32xf32> to vector<8x32xf32>
    %44 = vector.broadcast %41 : vector<8x1xf32> to vector<8x32xf32>
    %45 = arith.mulf %44, %43 : vector<8x32xf32>
    %46 = vector.extract_strided_slice %37 {offsets = [1, 0, 0], sizes = [1, 8, 1], strides = [1, 1, 1]} : vector<4x8x1xf32> to vector<1x8x1xf32>
    %47 = vector.shape_cast %46 : vector<1x8x1xf32> to vector<8x1xf32>
    %c1_26 = arith.constant 1 : index
    %c0_27 = arith.constant 0 : index
    %c0_28 = arith.constant 0 : index
    %48 = vector.load %arg2[%c1_26, %c0_27, %c0_28] : memref<4x8x32xf32, #tpu.memory_space<vmem>>, vector<1x8x32xf32>
    %49 = vector.shape_cast %48 : vector<1x8x32xf32> to vector<8x32xf32>
    %50 = vector.broadcast %47 : vector<8x1xf32> to vector<8x32xf32>
    %51 = arith.mulf %50, %49 : vector<8x32xf32>
    %52 = arith.addf %45, %51 : vector<8x32xf32>
    %53 = vector.extract_strided_slice %37 {offsets = [2, 0, 0], sizes = [1, 8, 1], strides = [1, 1, 1]} : vector<4x8x1xf32> to vector<1x8x1xf32>
    %54 = vector.shape_cast %53 : vector<1x8x1xf32> to vector<8x1xf32>
    %c2_29 = arith.constant 2 : index
    %c0_30 = arith.constant 0 : index
    %c0_31 = arith.constant 0 : index
    %55 = vector.load %arg2[%c2_29, %c0_30, %c0_31] : memref<4x8x32xf32, #tpu.memory_space<vmem>>, vector<1x8x32xf32>
    %56 = vector.shape_cast %55 : vector<1x8x32xf32> to vector<8x32xf32>
    %57 = vector.broadcast %54 : vector<8x1xf32> to vector<8x32xf32>
    %58 = arith.mulf %57, %56 : vector<8x32xf32>
    %59 = arith.addf %52, %58 : vector<8x32xf32>
    %60 = vector.extract_strided_slice %37 {offsets = [3, 0, 0], sizes = [1, 8, 1], strides = [1, 1, 1]} : vector<4x8x1xf32> to vector<1x8x1xf32>
    %61 = vector.shape_cast %60 : vector<1x8x1xf32> to vector<8x1xf32>
    %c3_32 = arith.constant 3 : index
    %c0_33 = arith.constant 0 : index
    %c0_34 = arith.constant 0 : index
    %62 = vector.load %arg2[%c3_32, %c0_33, %c0_34] : memref<4x8x32xf32, #tpu.memory_space<vmem>>, vector<1x8x32xf32>
    %63 = vector.shape_cast %62 : vector<1x8x32xf32> to vector<8x32xf32>
    %64 = vector.broadcast %61 : vector<8x1xf32> to vector<8x32xf32>
    %65 = arith.mulf %64, %63 : vector<8x32xf32>
    %66 = arith.addf %59, %65 : vector<8x32xf32>
    %67 = vector.broadcast %39 : vector<8x1xf32> to vector<8x32xf32>
    %68 = arith.mulf %66, %67 : vector<8x32xf32>
    %69 = arith.addf %68, %0 : vector<8x32xf32>
    %c0_35 = arith.constant 0 : index
    %c0_36 = arith.constant 0 : index
    %70 = vector.load %arg6[%c0_35, %c0_36] : memref<32x32xf32, #tpu.memory_space<vmem>>, vector<32x32xf32>
    %cst_37 = arith.constant dense<0.000000e+00> : vector<8x32xf32>
    %71 = tpu.matmul %69, %70, %cst_37 {dimension_numbers = #tpu.dot_dimension_numbers<[1], [0], [0], [1], [0, 0, 1, 1], [], []>} : vector<8x32xf32>, vector<32x32xf32>, vector<8x32xf32> -> vector<8x32xf32>
    %c0_38 = arith.constant 0 : index
    %c0_39 = arith.constant 0 : index
    %72 = vector.load %arg7[%c0_38, %c0_39] : memref<32x128xf32, #tpu.memory_space<vmem>>, vector<32x128xf32>
    %cst_40 = arith.constant dense<0.000000e+00> : vector<8x128xf32>
    %73 = tpu.matmul %71, %72, %cst_40 {dimension_numbers = #tpu.dot_dimension_numbers<[1], [0], [0], [1], [0, 0, 1, 1], [], []>} : vector<8x32xf32>, vector<32x128xf32>, vector<8x128xf32> -> vector<8x128xf32>
    %c0_41 = arith.constant 0 : index
    %c0_42 = arith.constant 0 : index
    %74 = vector.load %arg8[%c0_41, %c0_42] : memref<1x128xf32, #tpu.memory_space<vmem>>, vector<1x128xf32>
    %75 = vector.broadcast %74 : vector<1x128xf32> to vector<8x128xf32>
    %76 = arith.addf %73, %75 : vector<8x128xf32>
    %cst_43 = arith.constant 5.000000e-01 : f32
    %77 = vector.broadcast %cst_43 : f32 to vector<8x128xf32>
    %78 = arith.mulf %77, %76 : vector<8x128xf32>
    %cst_44 = arith.constant 0.707106769 : f32
    %79 = vector.broadcast %cst_44 : f32 to vector<8x128xf32>
    %80 = arith.mulf %76, %79 : vector<8x128xf32>
    %81 = math.erf %80 : vector<8x128xf32>
    %cst_45 = arith.constant 1.000000e+00 : f32
    %82 = vector.broadcast %cst_45 : f32 to vector<8x128xf32>
    %83 = arith.addf %82, %81 : vector<8x128xf32>
    %84 = arith.mulf %78, %83 : vector<8x128xf32>
    %c0_46 = arith.constant 0 : index
    %c0_47 = arith.constant 0 : index
    %85 = vector.load %arg9[%c0_46, %c0_47] : memref<128x32xf32, #tpu.memory_space<vmem>>, vector<128x32xf32>
    %cst_48 = arith.constant dense<0.000000e+00> : vector<8x32xf32>
    %86 = tpu.matmul %84, %85, %cst_48 {dimension_numbers = #tpu.dot_dimension_numbers<[1], [0], [0], [1], [0, 0, 1, 1], [], []>} : vector<8x128xf32>, vector<128x32xf32>, vector<8x32xf32> -> vector<8x32xf32>
    %c0_49 = arith.constant 0 : index
    %c0_50 = arith.constant 0 : index
    %87 = vector.load %arg10[%c0_49, %c0_50] : memref<1x32xf32, #tpu.memory_space<vmem>>, vector<1x32xf32>
    %88 = vector.broadcast %87 : vector<1x32xf32> to vector<8x32xf32>
    %89 = arith.addf %86, %88 : vector<8x32xf32>
    %c0_51 = arith.constant 0 : index
    %c0_52 = arith.constant 0 : index
    %90 = vector.load %arg11[%c0_51, %c0_52] : memref<8x32xf32, #tpu.memory_space<vmem>>, vector<8x32xf32>
    tpu.vector_store %arg11[%c0_51, %c0_52], %89 {strides = array<i32>} : memref<8x32xf32, #tpu.memory_space<vmem>>, vector<8x32xf32>,
    return
  }
  func.func @transform_0(%arg0: i32) -> (i32, i32) {
    %c0_i32 = arith.constant 0 : i32
    %c0_i32_0 = arith.constant 0 : i32
    return %arg0, %c0_i32 : i32, i32
  }
  func.func @transform_1(%arg0: i32) -> (i32, i32, i32) {
    %c0_i32 = arith.constant 0 : i32
    %c0_i32_0 = arith.constant 0 : i32
    %c0_i32_1 = arith.constant 0 : i32
    return %c0_i32, %arg0, %c0_i32_0 : i32, i32, i32
  }
  func.func @transform_2(%arg0: i32) -> (i32, i32) {
    %c0_i32 = arith.constant 0 : i32
    %c0_i32_0 = arith.constant 0 : i32
    %c0_i32_1 = arith.constant 0 : i32
    return %c0_i32, %c0_i32_0 : i32, i32
  }
  func.func @transform_3(%arg0: i32) -> (i32, i32) {
    %c0_i32 = arith.constant 0 : i32
    %c0_i32_0 = arith.constant 0 : i32
    %c0_i32_1 = arith.constant 0 : i32
    return %c0_i32, %c0_i32_0 : i32, i32
  }
  func.func @transform_4(%arg0: i32) -> (i32, i32) {
    %c0_i32 = arith.constant 0 : i32
    %c0_i32_0 = arith.constant 0 : i32
    %c0_i32_1 = arith.constant 0 : i32
    return %c0_i32, %c0_i32_0 : i32, i32
  }
  func.func @transform_5(%arg0: i32) -> (i32, i32) {
    %c0_i32 = arith.constant 0 : i32
    %c0_i32_0 = arith.constant 0 : i32
    %c0_i32_1 = arith.constant 0 : i32
    return %c0_i32, %c0_i32_0 : i32, i32
  }
  func.func @transform_6(%arg0: i32) -> (i32, i32) {
    %c0_i32 = arith.constant 0 : i32
    %c0_i32_0 = arith.constant 0 : i32
    %c0_i32_1 = arith.constant 0 : i32
    return %c0_i32, %c0_i32_0 : i32, i32
  }
  func.func @transform_7(%arg0: i32) -> (i32, i32) {
    %c0_i32 = arith.constant 0 : i32
    %c0_i32_0 = arith.constant 0 : i32
    %c0_i32_1 = arith.constant 0 : i32
    return %c0_i32, %c0_i32_0 : i32, i32
  }
  func.func @transform_8(%arg0: i32) -> (i32, i32) {
    %c0_i32 = arith.constant 0 : i32
    %c0_i32_0 = arith.constant 0 : i32
    %c0_i32_1 = arith.constant 0 : i32
    return %c0_i32, %c0_i32_0 : i32, i32
  }
  func.func @transform_9(%arg0: i32) -> (i32, i32) {
    %c0_i32 = arith.constant 0 : i32
    %c0_i32_0 = arith.constant 0 : i32
    %c0_i32_1 = arith.constant 0 : i32
    return %c0_i32, %c0_i32_0 : i32, i32
  }
  func.func @transform_10(%arg0: i32) -> (i32, i32) {
    %c0_i32 = arith.constant 0 : i32
    %c0_i32_0 = arith.constant 0 : i32
    return %arg0, %c0_i32 : i32, i32
  }
}

</mosaic_0001>

<llo_original>
// kernel: tpu_custom_call.1
$region0: #{tpu_custom_call.1}
  #allocation0 [shape = 'u32[]', space=smem, size = 0x4, offset = 0x4, fixed_abs, tag = 'smem constant byte address 0x4 - core index']
  #allocation1 [shape = 'u32[144,128]{1,0:T(1,128)}', space=vmem, size = 0x12000, scoped, tag = 'internal scratch']
  %s0 = inlined_call_operand.hbm [shape: f32[16,32], index: 0, kind: input, shape index: {}]
  %s1 = inlined_call_operand.vmem [shape: f32[4,16,32], index: 1, kind: input, shape index: {}]
  %s2 = inlined_call_operand.vmem [shape: f32[32,32], index: 2, kind: input, shape index: {}]
  %s3 = inlined_call_operand.vmem [shape: f32[1,32], index: 3, kind: input, shape index: {}]
  %s4 = inlined_call_operand.vmem [shape: f32[32,32], index: 4, kind: input, shape index: {}]
  %s5 = inlined_call_operand.vmem [shape: f32[32,32], index: 5, kind: input, shape index: {}]
  %s6 = inlined_call_operand.hbm [shape: f32[32,128], index: 6, kind: input, shape index: {}]
  %s7 = inlined_call_operand.vmem [shape: f32[1,128], index: 7, kind: input, shape index: {}]
  %s8 = inlined_call_operand.vmem [shape: f32[128,32], index: 8, kind: input, shape index: {}]
  %s9 = inlined_call_operand.vmem [shape: f32[1,32], index: 9, kind: input, shape index: {}]
  %s10 = inlined_call_operand.hbm [shape: f32[16,32], index: 10, kind: output, shape index: {}]
  %s11 = sld [smem:[#allocation0]]
  $region119: #{tpu_custom_call.1} parent=0
    _
  %s13 = ssub.s32 1, %s11
  %s14 = scalar_select 0, %s13, %s11
  $region1: #{tpu_custom_call.1} parent=0
    #allocation2 [shape = 'u8[8192]{0}', space=vmem, size = 0x2000, scoped, tag = 'input window, operand 0']
    #allocation3 [shape = 's32[2]{0}', space=sflag, size = 0x8, scoped, tag = 'scoped memory for tpu_custom_call.1']
    #allocation4 [shape = 's32[2]{0}', space=sflag, size = 0x8, scoped, tag = 'scoped memory for tpu_custom_call.1']
    #allocation5 [shape = 'u8[32768]{0}', space=vmem, size = 0x8000, scoped, tag = 'input window, operand 1']
    #allocation6 [shape = 'u8[16384]{0}', space=vmem, size = 0x4000, scoped, tag = 'input window, operand 6, single buffered']
    #allocation7 [shape = 's32[1]{0}', space=sflag, size = 0x4, scoped, tag = 'scoped memory for tpu_custom_call.1']
    #allocation8 [shape = 'u8[8192]{0}', space=vmem, size = 0x2000, scoped, tag = 'output window, operand 0']
    %15 = vsyncpa [#allocation3], 0
    %s16 = scalar_lea.sflag [#allocation3], 1
    %17 = vsyncpa %s16, 0
    %18 = vsyncpa [#allocation7], 0
    %19 = vsyncpa [#allocation4], 0
    %s20 = scalar_lea.sflag [#allocation4], 1
    %21 = vsyncpa %s20, 0
    loop: start=0, step=1, limit=4
    $region2: #{tpu_custom_call.1} parent=1 // loop_pre_header
      _
    $region3: #{tpu_custom_call.1} parent=1 // loop_header
      %s23 = sphi 0, %s27
      %p24 = scmp.ge.s32.totalorder %s23, 4
      %s33 = sphi 0, %s35
      %s36 = sphi 0, %s33
      %s37 = sphi 0, %s36
      %s53 = sphi 0, %s37
      %s59 = sphi 0, %s61
      %s62 = sphi 0, %s59
      %s63 = sphi 0, %s62
      %s79 = sphi 0, %s63
      %s83 = sphi 0, %s83
      %s85 = sphi 0, %s83
      %s86 = sphi 0, %s85
      %s100 = sphi 0, %s86
      %s104 = sphi 0, %s104
      %s106 = sphi 0, %s104
      %s107 = sphi 0, %s106
      %s121 = sphi 0, %s107
      %s125 = sphi 0, %s125
      %s127 = sphi 0, %s125
      %s128 = sphi 0, %s127
      %s142 = sphi 0, %s128
      %s146 = sphi 0, %s146
      %s148 = sphi 0, %s146
      %s149 = sphi 0, %s148
      %s163 = sphi 0, %s149
      %s167 = sphi 0, %s167
      %s169 = sphi 0, %s167
      %s170 = sphi 0, %s169
      %s184 = sphi 0, %s170
      %s188 = sphi 0, %s188
      %s190 = sphi 0, %s188
      %s191 = sphi 0, %s190
      %s205 = sphi 0, %s191
      %s209 = sphi 0, %s209
      %s211 = sphi 0, %s209
      %s212 = sphi 0, %s211
      %s226 = sphi 0, %s212
      %s230 = sphi 0, %s230
      %s232 = sphi 0, %s230
      %s233 = sphi 0, %s232
      %s247 = sphi 0, %s233
      %s253 = sphi 0, %s255
      %s256 = sphi 0, %s253
      %s257 = sphi 0, %s256
      %s273 = sphi 0, %s257
    $region4: #{tpu_custom_call.1} parent=1 // loop_header_branch
      %26 = sbr.rel (%p24) target = $region8
    $region5: #{tpu_custom_call.1} parent=1 // loop_body
      %s28 = ssub.s32 %s23, 1
      %s29 = ssub.s32 %s23, 2
      %s30 = sadd.s32 %s23, 1
      %s31 = ssub.s32 %s23, %s30
      %p32 = scmp.eq.s32.totalorder %s31, 0
      %s34 = sadd.s32 %s33, 1
      %s35 = scalar_select %p32, %s33, %s34
      %p38 = pneg %p32
      %p39 = scmp.eq.s32.totalorder %s23, 1
      %p40 = por %p38, %p39
      %p41 = scmp.ne.s32.totalorder %s33, %s36
      %p42 = scmp.eq.s32.totalorder %s23, 0
      %p43 = por %p41, %p42
      %p44 = scmp.ne.s32.totalorder %s33, %s36
      %p45 = scmp.eq.s32.totalorder %s28, 1
      %p46 = por %p44, %p45
      %p47 = scmp.ne.s32.totalorder %s36, %s37
      %p48 = scmp.eq.s32.totalorder %s28, 0
      %p49 = por %p47, %p48
      %p50 = scmp.ne.s32.totalorder %s36, %s37
      %p51 = scmp.eq.s32.totalorder %s29, 1
      %p52 = por %p50, %p51
      %p54 = scmp.ne.s32.totalorder %s37, %s53
      %p55 = scmp.eq.s32.totalorder %s29, 0
      %p56 = por %p54, %p55
      %s57 = ssub.s32 %s23, %s30
      %p58 = scmp.eq.s32.totalorder %s57, 0
      %s60 = sadd.s32 %s59, 1
      %s61 = scalar_select %p58, %s59, %s60
      %p64 = pneg %p58
      %p65 = scmp.eq.s32.totalorder %s23, 1
      %p66 = por %p64, %p65
      %p67 = scmp.ne.s32.totalorder %s59, %s62
      %p68 = scmp.eq.s32.totalorder %s23, 0
      %p69 = por %p67, %p68
      %p70 = scmp.ne.s32.totalorder %s59, %s62
      %p71 = scmp.eq.s32.totalorder %s28, 1
      %p72 = por %p70, %p71
      %p73 = scmp.ne.s32.totalorder %s62, %s63
      %p74 = scmp.eq.s32.totalorder %s28, 0
      %p75 = por %p73, %p74
      %p76 = scmp.ne.s32.totalorder %s62, %s63
      %p77 = scmp.eq.s32.totalorder %s29, 1
      %p78 = por %p76, %p77
      %p80 = scmp.ne.s32.totalorder %s63, %s79
      %p81 = scmp.eq.s32.totalorder %s29, 0
      %p82 = por %p80, %p81
      %s84 = sadd.s32 %s83, 1
      %p87 = scmp.eq.s32.totalorder %s23, 1
      %p88 = scmp.ne.s32.totalorder %s83, %s85
      %p89 = scmp.eq.s32.totalorder %s23, 0
      %p90 = por %p88, %p89
      %p91 = scmp.ne.s32.totalorder %s83, %s85
      %p92 = scmp.eq.s32.totalorder %s28, 1
      %p93 = por %p91, %p92
      %p94 = scmp.ne.s32.totalorder %s85, %s86
      %p95 = scmp.eq.s32.totalorder %s28, 0
      %p96 = por %p94, %p95
      %p97 = scmp.ne.s32.totalorder %s85, %s86
      %p98 = scmp.eq.s32.totalorder %s29, 1
      %p99 = por %p97, %p98
      %p101 = scmp.ne.s32.totalorder %s86, %s100
      %p102 = scmp.eq.s32.totalorder %s29, 0
      %p103 = por %p101, %p102
      %s105 = sadd.s32 %s104, 1
      %p108 = scmp.eq.s32.totalorder %s23, 1
      %p109 = scmp.ne.s32.totalorder %s104, %s106
      %p110 = scmp.eq.s32.totalorder %s23, 0
      %p111 = por %p109, %p110
      %p112 = scmp.ne.s32.totalorder %s104, %s106
      %p113 = scmp.eq.s32.totalorder %s28, 1
      %p114 = por %p112, %p113
      %p115 = scmp.ne.s32.totalorder %s106, %s107
      %p116 = scmp.eq.s32.totalorder %s28, 0
      %p117 = por %p115, %p116
      %p118 = scmp.ne.s32.totalorder %s106, %s107
      %p119 = scmp.eq.s32.totalorder %s29, 1
      %p120 = por %p118, %p119
      %p122 = scmp.ne.s32.totalorder %s107, %s121
      %p123 = scmp.eq.s32.totalorder %s29, 0
      %p124 = por %p122, %p123
      %s126 = sadd.s32 %s125, 1
      %p129 = scmp.eq.s32.totalorder %s23, 1
      %p130 = scmp.ne.s32.totalorder %s125, %s127
      %p131 = scmp.eq.s32.totalorder %s23, 0
      %p132 = por %p130, %p131
      %p133 = scmp.ne.s32.totalorder %s125, %s127
      %p134 = scmp.eq.s32.totalorder %s28, 1
      %p135 = por %p133, %p134
      %p136 = scmp.ne.s32.totalorder %s127, %s128
      %p137 = scmp.eq.s32.totalorder %s28, 0
      %p138 = por %p136, %p137
      %p139 = scmp.ne.s32.totalorder %s127, %s128
      %p140 = scmp.eq.s32.totalorder %s29, 1
      %p141 = por %p139, %p140
      %p143 = scmp.ne.s32.totalorder %s128, %s142
      %p144 = scmp.eq.s32.totalorder %s29, 0
      %p145 = por %p143, %p144
      %s147 = sadd.s32 %s146, 1
      %p150 = scmp.eq.s32.totalorder %s23, 1
      %p151 = scmp.ne.s32.totalorder %s146, %s148
      %p152 = scmp.eq.s32.totalorder %s23, 0
      %p153 = por %p151, %p152
      %p154 = scmp.ne.s32.totalorder %s146, %s148
      %p155 = scmp.eq.s32.totalorder %s28, 1
      %p156 = por %p154, %p155
      %p157 = scmp.ne.s32.totalorder %s148, %s149
      %p158 = scmp.eq.s32.totalorder %s28, 0
      %p159 = por %p157, %p158
      %p160 = scmp.ne.s32.totalorder %s148, %s149
      %p161 = scmp.eq.s32.totalorder %s29, 1
      %p162 = por %p160, %p161
      %p164 = scmp.ne.s32.totalorder %s149, %s163
      %p165 = scmp.eq.s32.totalorder %s29, 0
      %p166 = por %p164, %p165
      %s168 = sadd.s32 %s167, 1
      %p171 = scmp.eq.s32.totalorder %s23, 1
      %p172 = scmp.ne.s32.totalorder %s167, %s169
      %p173 = scmp.eq.s32.totalorder %s23, 0
      %p174 = por %p172, %p173
      %p175 = scmp.ne.s32.totalorder %s167, %s169
      %p176 = scmp.eq.s32.totalorder %s28, 1
      %p177 = por %p175, %p176
      %p178 = scmp.ne.s32.totalorder %s169, %s170
      %p179 = scmp.eq.s32.totalorder %s28, 0
      %p180 = por %p178, %p179
      %p181 = scmp.ne.s32.totalorder %s169, %s170
      %p182 = scmp.eq.s32.totalorder %s29, 1
      %p183 = por %p181, %p182
      %p185 = scmp.ne.s32.totalorder %s170, %s184
      %p186 = scmp.eq.s32.totalorder %s29, 0
      %p187 = por %p185, %p186
      %s189 = sadd.s32 %s188, 1
      %p192 = scmp.eq.s32.totalorder %s23, 1
      %p193 = scmp.ne.s32.totalorder %s188, %s190
      %p194 = scmp.eq.s32.totalorder %s23, 0
      %p195 = por %p193, %p194
      %p196 = scmp.ne.s32.totalorder %s188, %s190
      %p197 = scmp.eq.s32.totalorder %s28, 1
      %p198 = por %p196, %p197
      %p199 = scmp.ne.s32.totalorder %s190, %s191
      %p200 = scmp.eq.s32.totalorder %s28, 0
      %p201 = por %p199, %p200
      %p202 = scmp.ne.s32.totalorder %s190, %s191
      %p203 = scmp.eq.s32.totalorder %s29, 1
      %p204 = por %p202, %p203
      %p206 = scmp.ne.s32.totalorder %s191, %s205
      %p207 = scmp.eq.s32.totalorder %s29, 0
      %p208 = por %p206, %p207
      %s210 = sadd.s32 %s209, 1
      %p213 = scmp.eq.s32.totalorder %s23, 1
      %p214 = scmp.ne.s32.totalorder %s209, %s211
      %p215 = scmp.eq.s32.totalorder %s23, 0
      %p216 = por %p214, %p215
      %p217 = scmp.ne.s32.totalorder %s209, %s211
      %p218 = scmp.eq.s32.totalorder %s28, 1
      %p219 = por %p217, %p218
      %p220 = scmp.ne.s32.totalorder %s211, %s212
      %p221 = scmp.eq.s32.totalorder %s28, 0
      %p222 = por %p220, %p221
      %p223 = scmp.ne.s32.totalorder %s211, %s212
      %p224 = scmp.eq.s32.totalorder %s29, 1
      %p225 = por %p223, %p224
      %p227 = scmp.ne.s32.totalorder %s212, %s226
      %p228 = scmp.eq.s32.totalorder %s29, 0
      %p229 = por %p227, %p228
      %s231 = sadd.s32 %s230, 1
      %p234 = scmp.eq.s32.totalorder %s23, 1
      %p235 = scmp.ne.s32.totalorder %s230, %s232
      %p236 = scmp.eq.s32.totalorder %s23, 0
      %p237 = por %p235, %p236
      %p238 = scmp.ne.s32.totalorder %s230, %s232
      %p239 = scmp.eq.s32.totalorder %s28, 1
      %p240 = por %p238, %p239
      %p241 = scmp.ne.s32.totalorder %s232, %s233
      %p242 = scmp.eq.s32.totalorder %s28, 0
      %p243 = por %p241, %p242
      %p244 = scmp.ne.s32.totalorder %s232, %s233
      %p245 = scmp.eq.s32.totalorder %s29, 1
      %p246 = por %p244, %p245
      %p248 = scmp.ne.s32.totalorder %s233, %s247
      %p249 = scmp.eq.s32.totalorder %s29, 0
      %p250 = por %p248, %p249
      %s251 = ssub.s32 %s23, %s30
      %p252 = scmp.eq.s32.totalorder %s251, 0
      %s254 = sadd.s32 %s253, 1
      %s255 = scalar_select %p252, %s253, %s254
      %p258 = pneg %p252
      %p259 = scmp.eq.s32.totalorder %s23, 1
      %p260 = por %p258, %p259
      %p261 = scmp.ne.s32.totalorder %s253, %s256
      %p262 = scmp.eq.s32.totalorder %s23, 0
      %p263 = por %p261, %p262
      %p264 = scmp.ne.s32.totalorder %s253, %s256
      %p265 = scmp.eq.s32.totalorder %s28, 1
      %p266 = por %p264, %p265
      %p267 = scmp.ne.s32.totalorder %s256, %s257
      %p268 = scmp.eq.s32.totalorder %s28, 0
      %p269 = por %p267, %p268
      %p270 = scmp.ne.s32.totalorder %s256, %s257
      %p271 = scmp.eq.s32.totalorder %s29, 1
      %p272 = por %p270, %p271
      %p274 = scmp.ne.s32.totalorder %s257, %s273
      %p275 = scmp.eq.s32.totalorder %s29, 0
      %p276 = por %p274, %p275
      %p277 = scmp.le.s32.totalorder 1, %s23
      %p278 = scmp.lt.s32.totalorder %s23, 3
      %p279 = pnand %p277, %p278
      %p280 = pneg %p279
      // Predicated region
      $region9: #{tpu_custom_call.1} parent=5 // pred_check
        _
      $region10: #{tpu_custom_call.1} parent=5 // pred_check_branch
        %282 = sbr.rel (%p279) target = $region12
      $region11: #{tpu_custom_call.1} parent=5 // pred_region
        %s283 = ssub.s32 %s23, 1
        // Predicated region
        $region13: #{tpu_custom_call.1} parent=11 // pred_check
          %p284 = pneg %p96
        $region14: #{tpu_custom_call.1} parent=11 // pred_check_branch
          %286 = sbr.rel (%p284) target = $region16
        $region15: #{tpu_custom_call.1} parent=11 // pred_region
          _
        $region16: #{tpu_custom_call.1} parent=11 // pred_fallthru
          _
        // Predicated region
        $region17: #{tpu_custom_call.1} parent=11 // pred_check
          %p287 = pneg %p117
        $region18: #{tpu_custom_call.1} parent=11 // pred_check_branch
          %289 = sbr.rel (%p287) target = $region20
        $region19: #{tpu_custom_call.1} parent=11 // pred_region
          _
        $region20: #{tpu_custom_call.1} parent=11 // pred_fallthru
          _
        // Predicated region
        $region21: #{tpu_custom_call.1} parent=11 // pred_check
          %p290 = pneg %p138
        $region22: #{tpu_custom_call.1} parent=11 // pred_check_branch
          %292 = sbr.rel (%p290) target = $region24
        $region23: #{tpu_custom_call.1} parent=11 // pred_region
          _
        $region24: #{tpu_custom_call.1} parent=11 // pred_fallthru
          _
        // Predicated region
        $region25: #{tpu_custom_call.1} parent=11 // pred_check
          %p293 = pneg %p159
        $region26: #{tpu_custom_call.1} parent=11 // pred_check_branch
          %295 = sbr.rel (%p293) target = $region28
        $region27: #{tpu_custom_call.1} parent=11 // pred_region
          _
        $region28: #{tpu_custom_call.1} parent=11 // pred_fallthru
          _
        // Predicated region
        $region29: #{tpu_custom_call.1} parent=11 // pred_check
          %p296 = pneg %p180
        $region30: #{tpu_custom_call.1} parent=11 // pred_check_branch
          %298 = sbr.rel (%p296) target = $region32
        $region31: #{tpu_custom_call.1} parent=11 // pred_region
          %s300 = ssub.s32 512, 512
          %301 = vsyncadd [#allocation7], %s300
          %s302 = sshll.u32 [#allocation6], 4
          %s303 = int_to_ptr.vmem [resolvable:$true] %s302
          %308 = dma.hbm_to_vmem [thread:$0]  %s6, 512, %s303, [#allocation7], 128, 128, 8
        $region32: #{tpu_custom_call.1} parent=11 // pred_fallthru
          _
        // Predicated region
        $region33: #{tpu_custom_call.1} parent=11 // pred_check
          %p309 = pneg %p201
        $region34: #{tpu_custom_call.1} parent=11 // pred_check_branch
          %311 = sbr.rel (%p309) target = $region36
        $region35: #{tpu_custom_call.1} parent=11 // pred_region
          _
        $region36: #{tpu_custom_call.1} parent=11 // pred_fallthru
          _
        // Predicated region
        $region37: #{tpu_custom_call.1} parent=11 // pred_check
          %p312 = pneg %p222
        $region38: #{tpu_custom_call.1} parent=11 // pred_check_branch
          %314 = sbr.rel (%p312) target = $region40
        $region39: #{tpu_custom_call.1} parent=11 // pred_region
          _
        $region40: #{tpu_custom_call.1} parent=11 // pred_fallthru
          _
        // Predicated region
        $region41: #{tpu_custom_call.1} parent=11 // pred_check
          %p315 = pneg %p243
        $region42: #{tpu_custom_call.1} parent=11 // pred_check_branch
          %317 = sbr.rel (%p315) target = $region44
        $region43: #{tpu_custom_call.1} parent=11 // pred_region
          _
        $region44: #{tpu_custom_call.1} parent=11 // pred_fallthru
          _
      $region12: #{tpu_custom_call.1} parent=5 // pred_fallthru
        _
      %p318 = scmp.lt.s32.totalorder %s23, 2
      // Predicated region
      $region45: #{tpu_custom_call.1} parent=5 // pred_check
        %p319 = pneg %p318
      $region46: #{tpu_custom_call.1} parent=5 // pred_check_branch
        %321 = sbr.rel (%p319) target = $region48
      $region47: #{tpu_custom_call.1} parent=5 // pred_region
        // Predicated region
        $region49: #{tpu_custom_call.1} parent=47 // pred_check
          %p322 = pneg %p43
        $region50: #{tpu_custom_call.1} parent=47 // pred_check_branch
          %324 = sbr.rel (%p322) target = $region52
        $region51: #{tpu_custom_call.1} parent=47 // pred_region
          %s325 = sand.u32 %s33, 1
          %s326 = scalar_lea.sflag [#allocation3], %s325
          %s327 = sand.u32 %s33, 1
          %s328 = smul.addr %s327, 8
          %s329 = scalar_lea.vmem [#allocation2], %s328
          %s331 = ssub.s32 128, 128
          %332 = vsyncadd %s326, %s331
          %s333 = smul.addr %s23, 128
          %s334 = scalar_lea.hbm %s0, %s333
          %s336 = sshll.u32 %s329, 4
          %s337 = int_to_ptr.vmem [resolvable:$true] %s336
          %339 = dma.hbm_to_vmem [thread:$0]  %s334, 128, %s337, %s326
        $region52: #{tpu_custom_call.1} parent=47 // pred_fallthru
          _
        // Predicated region
        $region53: #{tpu_custom_call.1} parent=47 // pred_check
          %p340 = pneg %p69
        $region54: #{tpu_custom_call.1} parent=47 // pred_check_branch
          %342 = sbr.rel (%p340) target = $region56
        $region55: #{tpu_custom_call.1} parent=47 // pred_region
          %s343 = sand.u32 %s59, 1
          %s344 = sand.u32 %s59, 1
          %s345 = smul.addr %s344, 32
          %s346 = scalar_lea.vmem [#allocation5], %s345
          %s347 = smul.addr %s23, 8
          %s348 = scalar_lea.vmem %s1, %s347
          // Predicated region
          $region57: #{tpu_custom_call.1} parent=55 // pred_check
            _
          $region58: #{tpu_custom_call.1} parent=55 // pred_check_branch
            %350 = sbr.rel (0) target = $region60
          $region59: #{tpu_custom_call.1} parent=55 // pred_region
            // Predicated region
            $region61: #{tpu_custom_call.1} parent=59 // pred_check
              _
            $region62: #{tpu_custom_call.1} parent=59 // pred_check_branch
              %352 = sbr.rel (0) target = $region64
            $region63: #{tpu_custom_call.1} parent=59 // pred_region
              // Predicated region
              $region76: #{tpu_custom_call.1} parent=63 // pred_check
                _
              $region77: #{tpu_custom_call.1} parent=63 // pred_check_branch
                %374 = sbr.rel (0) target = $region79
              $region78: #{tpu_custom_call.1} parent=63 // pred_region
                loop: start=0, step=1, limit=1
                $region80: #{tpu_custom_call.1} parent=78 // loop_pre_header
                  _
                $region81: #{tpu_custom_call.1} parent=78 // loop_header
                  %s376 = sphi 0, %s380
                  %p377 = scmp.ge.s32.totalorder %s376, 1
                  %s381 = sphi %s348, %s348
                  %s382 = sphi %s346, %s346
                $region82: #{tpu_custom_call.1} parent=78 // loop_header_branch
                  %379 = sbr.rel (%p377) target = $region86
                $region83: #{tpu_custom_call.1} parent=78 // loop_body
                  %v383 = vld [vmem:[%s381] sm:$0xff]
                  %384 = vst [vmem:[%s382] sm:$0xff] %v383
                  %v385 = vld [vmem:[%s381 + $0x10] sm:$0xff]
                  %386 = vst [vmem:[%s382 + $0x8] sm:$0xff] %v385
                  %v387 = vld [vmem:[%s381 + $0x20] sm:$0xff]
                  %388 = vst [vmem:[%s382 + $0x10] sm:$0xff] %v387
                  %v389 = vld [vmem:[%s381 + $0x30] sm:$0xff]
                  %390 = vst [vmem:[%s382 + $0x18] sm:$0xff] %v389
                $region84: #{tpu_custom_call.1} parent=78 // loop_footer
                  %s380 = sadd.s32 1, %s376
                $region85: #{tpu_custom_call.1} parent=78 // loop_footer_branch
                  %375 = sbr.rel target = $region81
                $region86: #{tpu_custom_call.1} parent=78 // loop_exit
                  _
              $region79: #{tpu_custom_call.1} parent=63 // pred_fallthru
                _
              // Predicated region
              $region87: #{tpu_custom_call.1} parent=63 // pred_check
                _
              $region88: #{tpu_custom_call.1} parent=63 // pred_check_branch
                %392 = sbr.rel target = $region90
              $region89: #{tpu_custom_call.1} parent=63 // pred_region
                _
              $region90: #{tpu_custom_call.1} parent=63 // pred_fallthru
                _
            $region64: #{tpu_custom_call.1} parent=59 // pred_fallthru
              _
            // Predicated region
            $region65: #{tpu_custom_call.1} parent=59 // pred_check
              _
            $region66: #{tpu_custom_call.1} parent=59 // pred_check_branch
              %354 = sbr.rel target = $region68
            $region67: #{tpu_custom_call.1} parent=59 // pred_region
              %s356 = ssub.s32 256, 1
              loop: start=0, step=1, limit=1
              $region69: #{tpu_custom_call.1} parent=67 // loop_pre_header
                _
              $region70: #{tpu_custom_call.1} parent=67 // loop_header
                %s358 = sphi 0, %s362
                %p359 = scmp.ge.s32.totalorder %s358, 1
                %s363 = sphi %s348, %s348
                %s364 = sphi %s346, %s346
              $region71: #{tpu_custom_call.1} parent=67 // loop_header_branch
                %361 = sbr.rel (%p359) target = $region75
              $region72: #{tpu_custom_call.1} parent=67 // loop_body
                %v365 = vld [vmem:[%s363] sm:%s356]
                %366 = vst [vmem:[%s364] sm:%s356] %v365
                %v367 = vld [vmem:[%s363 + $0x10] sm:%s356]
                %368 = vst [vmem:[%s364 + $0x8] sm:%s356] %v367
                %v369 = vld [vmem:[%s363 + $0x20] sm:%s356]
                %370 = vst [vmem:[%s364 + $0x10] sm:%s356] %v369
                %v371 = vld [vmem:[%s363 + $0x30] sm:%s356]
                %372 = vst [vmem:[%s364 + $0x18] sm:%s356] %v371
              $region73: #{tpu_custom_call.1} parent=67 // loop_footer
                %s362 = sadd.s32 1, %s358
              $region74: #{tpu_custom_call.1} parent=67 // loop_footer_branch
                %357 = sbr.rel target = $region70
              $region75: #{tpu_custom_call.1} parent=67 // loop_exit
                _
            $region68: #{tpu_custom_call.1} parent=59 // pred_fallthru
              _
          $region60: #{tpu_custom_call.1} parent=55 // pred_fallthru
            _
          %393 = vnop
        $region56: #{tpu_custom_call.1} parent=47 // pred_fallthru
          _
      $region48: #{tpu_custom_call.1} parent=5 // pred_fallthru
        _
      %p394 = scmp.le.s32.totalorder 1, %s23
      %p395 = scmp.lt.s32.totalorder %s23, 3
      %p396 = pnand %p394, %p395
      %p397 = pneg %p396
      // Predicated region
      $region91: #{tpu_custom_call.1} parent=5 // pred_check
        _
      $region92: #{tpu_custom_call.1} parent=5 // pred_check_branch
        %399 = sbr.rel (%p396) target = $region94
      $region93: #{tpu_custom_call.1} parent=5 // pred_region
        %s400 = ssub.s32 %s23, 1
        %s401 = sand.u32 %s36, 1
        %s402 = scalar_lea.sflag [#allocation3], %s401
        %s403 = sand.u32 %s36, 1
        %s404 = smul.addr %s403, 8
        %s405 = scalar_lea.vmem [#allocation2], %s404
        // Predicated region
        $region95: #{tpu_custom_call.1} parent=93 // pred_check
          %p406 = pneg %p49
        $region96: #{tpu_custom_call.1} parent=93 // pred_check_branch
          %408 = sbr.rel (%p406) target = $region98
        $region97: #{tpu_custom_call.1} parent=93 // pred_region
          %409 = dma.done %s402, 128
        $region98: #{tpu_custom_call.1} parent=93 // pred_fallthru
          _
        %s410 = sand.u32 %s62, 1
        %s411 = sand.u32 %s62, 1
        %s412 = smul.addr %s411, 32
        %s413 = scalar_lea.vmem [#allocation5], %s412
        // Predicated region
        $region99: #{tpu_custom_call.1} parent=93 // pred_check
          %p414 = pneg %p75
        $region100: #{tpu_custom_call.1} parent=93 // pred_check_branch
          %416 = sbr.rel (%p414) target = $region102
        $region101: #{tpu_custom_call.1} parent=93 // pred_region
          _
        $region102: #{tpu_custom_call.1} parent=93 // pred_fallthru
          _
        // Predicated region
        $region103: #{tpu_custom_call.1} parent=93 // pred_check
          %p417 = pneg %p180
        $region104: #{tpu_custom_call.1} parent=93 // pred_check_branch
          %419 = sbr.rel (%p417) target = $region106
        $region105: #{tpu_custom_call.1} parent=93 // pred_region
          %420 = dma.done [#allocation7], 512
        $region106: #{tpu_custom_call.1} parent=93 // pred_fallthru
          _
        %s421 = sand.u32 %s36, 1
        %s422 = scalar_lea.sflag [#allocation3], %s421
        %s423 = sand.u32 %s36, 1
        %s424 = smul.addr %s423, 8
        %s425 = scalar_lea.vmem [#allocation2], %s424
        %p426 = pneg %p49
        %p427 = pneg %p46
        %s428 = sand.u32 %s62, 1
        %s429 = sand.u32 %s62, 1
        %s430 = smul.addr %s429, 32
        %s431 = scalar_lea.vmem [#allocation5], %s430
        %p432 = pneg %p75
        %p433 = pneg %p72
        %p434 = pneg %p96
        %p435 = pneg %p93
        %p436 = pneg %p117
        %p437 = pneg %p114
        %p438 = pneg %p138
        %p439 = pneg %p135
        %p440 = pneg %p159
        %p441 = pneg %p156
        %p442 = pneg %p180
        %p443 = pneg %p177
        %p444 = pneg %p201
        %p445 = pneg %p198
        %p446 = pneg %p222
        %p447 = pneg %p219
        %p448 = pneg %p243
        %p449 = pneg %p240
        %p450 = pneg %p269
        %p451 = pneg %p266
        %s452 = sand.u32 %s256, 1
        %s453 = scalar_lea.sflag [#allocation4], %s452
        %s454 = sand.u32 %s256, 1
        %s455 = smul.addr %s454, 8
        %s456 = scalar_lea.vmem [#allocation8], %s455
        %v457 = vld [vmem:[%s405] sm:$0xff]
        %v458 = vld [vmem:[%s2] sm:$0xff]
        %v459 = vld [vmem:[%s2 + $0x8] sm:$0xff]
        %v460 = vld [vmem:[%s2 + $0x10] sm:$0xff]
        %v461 = vld [vmem:[%s2 + $0x18] sm:$0xff]
        %v462 = vld [vmem:[%s3] sm:$0x1]
        %v464 = vlaneseq
        %v465 = vshrl.u32 %v464, 7
        %v466 = vsub.s32 0, %v465
        %v467 = vrot.slane %v462, %v466
        %vm469 = vcmask 261120
        %v471 = vsel %vm469, %v457, 0
        %473 = vmatprep.subr.mxu0 0.0
        %474 = vmatpush1.msra.mxu0 0.0
        %475 = vmatprep.subr.mxu0 0.0
        %476 = vmatpush1.msra.mxu0 0.0
        %477 = vmatprep.subr.mxu0 0.0
        %478 = vmatpush1.msra.mxu0 0.0
        %479 = vmatprep.subr.mxu0 0.0
        %480 = vmatpush1.msra.mxu0 0.0
        %481 = vmatprep.subr.mxu0 0.0
        %482 = vmatpush1.msra.mxu0 0.0
        %483 = vmatprep.subr.mxu0 0.0
        %484 = vmatpush1.msra.mxu0 0.0
        %485 = vmatprep.subr.mxu0 0.0
        %486 = vmatpush1.msra.mxu0 0.0
        %487 = vmatprep.subr.mxu0 0.0
        %488 = vmatpush1.msra.mxu0 0.0
        %489 = vmatprep.subr.mxu0 0.0
        %490 = vmatpush1.msra.mxu0 0.0
        %491 = vmatprep.subr.mxu0 0.0
        %492 = vmatpush1.msra.mxu0 0.0
        %493 = vmatprep.subr.mxu0 0.0
        %494 = vmatpush1.msra.mxu0 0.0
        %495 = vmatprep.subr.mxu0 0.0
        %496 = vmatpush1.msra.mxu0 0.0
        %497 = vmatprep.subr.mxu0 0.0
        %498 = vmatpush1.msra.mxu0 %v461
        %499 = vmatprep.subr.mxu0 0.0
        %500 = vmatpush1.msra.mxu0 %v460
        %501 = vmatprep.subr.mxu0 0.0
        %502 = vmatpush1.msra.mxu0 %v459
        %503 = vmatprep.subr.mxu0 0.0
        %504 = vmatpush1.msra.mxu0 %v458
        %505 = vmatprep.subr.mxu0 0.0
        %506 = vmatpush2.msra.mxu0 0.0
        %507 = vmatprep.subr.mxu0 0.0
        %508 = vmatpush2.msra.mxu0 0.0
        %509 = vmatprep.subr.mxu0 0.0
        %510 = vmatpush2.msra.mxu0 0.0
        %511 = vmatprep.subr.mxu0 0.0
        %512 = vmatpush2.msra.mxu0 0.0
        %513 = vmatprep.subr.mxu0 0.0
        %514 = vmatpush2.msra.mxu0 0.0
        %515 = vmatprep.subr.mxu0 0.0
        %516 = vmatpush2.msra.mxu0 0.0
        %517 = vmatprep.subr.mxu0 0.0
        %518 = vmatpush2.msra.mxu0 0.0
        %519 = vmatprep.subr.mxu0 0.0
        %520 = vmatpush2.msra.mxu0 0.0
        %521 = vmatprep.subr.mxu0 0.0
        %522 = vmatpush2.msra.mxu0 0.0
        %523 = vmatprep.subr.mxu0 0.0
        %524 = vmatpush2.msra.mxu0 0.0
        %525 = vmatprep.subr.mxu0 0.0
        %526 = vmatpush2.msra.mxu0 0.0
        %527 = vmatprep.subr.mxu0 0.0
        %528 = vmatpush2.msra.mxu0 0.0
        %529 = vmatprep.subr.mxu0 0.0
        %530 = vmatpush2.msra.mxu0 0.0
        %531 = vmatprep.subr.mxu0 0.0
        %532 = vmatpush2.msra.mxu0 0.0
        %533 = vmatprep.subr.mxu0 0.0
        %534 = vmatpush2.msra.mxu0 0.0
        %535 = vmatprep.subr.mxu0 0.0
        %536 = vmatpush2.msra.mxu0 0.0
        %537 = vmatprep.mubr.f32.mxu0 0.0
        %538 = vmatmul.mubr.f32.gmra.mxu0 %v471
        %v539 = vpop.f32.mrf.mxu0
        %v540 = vadd.f32 %v467, %v539
        %v541 = vpop.f32.mrf.mxu0
        %542 = vdwg.mxu0
        %v543 = vld [vmem:[%s4] sm:$0xff]
        %v544 = vld [vmem:[%s4 + $0x8] sm:$0xff]
        %v545 = vld [vmem:[%s4 + $0x10] sm:$0xff]
        %v546 = vld [vmem:[%s4 + $0x18] sm:$0xff]
        %v548 = vsel %vm469, %v540, 0
        %550 = vmatprep.subr.mxu0 0.0
        %551 = vmatpush1.msra.mxu0 0.0
        %552 = vmatprep.subr.mxu0 0.0
        %553 = vmatpush1.msra.mxu0 0.0
        %554 = vmatprep.subr.mxu0 0.0
        %555 = vmatpush1.msra.mxu0 0.0
        %556 = vmatprep.subr.mxu0 0.0
        %557 = vmatpush1.msra.mxu0 0.0
        %558 = vmatprep.subr.mxu0 0.0
        %559 = vmatpush1.msra.mxu0 0.0
        %560 = vmatprep.subr.mxu0 0.0
        %561 = vmatpush1.msra.mxu0 0.0
        %562 = vmatprep.subr.mxu0 0.0
        %563 = vmatpush1.msra.mxu0 0.0
        %564 = vmatprep.subr.mxu0 0.0
        %565 = vmatpush1.msra.mxu0 0.0
        %566 = vmatprep.subr.mxu0 0.0
        %567 = vmatpush1.msra.mxu0 0.0
        %568 = vmatprep.subr.mxu0 0.0
        %569 = vmatpush1.msra.mxu0 0.0
        %570 = vmatprep.subr.mxu0 0.0
        %571 = vmatpush1.msra.mxu0 0.0
        %572 = vmatprep.subr.mxu0 0.0
        %573 = vmatpush1.msra.mxu0 0.0
        %574 = vmatprep.subr.mxu0 0.0
        %575 = vmatpush1.msra.mxu0 %v546
        %576 = vmatprep.subr.mxu0 0.0
        %577 = vmatpush1.msra.mxu0 %v545
        %578 = vmatprep.subr.mxu0 0.0
        %579 = vmatpush1.msra.mxu0 %v544
        %580 = vmatprep.subr.mxu0 0.0
        %581 = vmatpush1.msra.mxu0 %v543
        %582 = vmatprep.subr.mxu0 0.0
        %583 = vmatpush2.msra.mxu0 0.0
        %584 = vmatprep.subr.mxu0 0.0
        %585 = vmatpush2.msra.mxu0 0.0
        %586 = vmatprep.subr.mxu0 0.0
        %587 = vmatpush2.msra.mxu0 0.0
        %588 = vmatprep.subr.mxu0 0.0
        %589 = vmatpush2.msra.mxu0 0.0
        %590 = vmatprep.subr.mxu0 0.0
        %591 = vmatpush2.msra.mxu0 0.0
        %592 = vmatprep.subr.mxu0 0.0
        %593 = vmatpush2.msra.mxu0 0.0
        %594 = vmatprep.subr.mxu0 0.0
        %595 = vmatpush2.msra.mxu0 0.0
        %596 = vmatprep.subr.mxu0 0.0
        %597 = vmatpush2.msra.mxu0 0.0
        %598 = vmatprep.subr.mxu0 0.0
        %599 = vmatpush2.msra.mxu0 0.0
        %600 = vmatprep.subr.mxu0 0.0
        %601 = vmatpush2.msra.mxu0 0.0
        %602 = vmatprep.subr.mxu0 0.0
        %603 = vmatpush2.msra.mxu0 0.0
        %604 = vmatprep.subr.mxu0 0.0
        %605 = vmatpush2.msra.mxu0 0.0
        %606 = vmatprep.subr.mxu0 0.0
        %607 = vmatpush2.msra.mxu0 0.0
        %608 = vmatprep.subr.mxu0 0.0
        %609 = vmatpush2.msra.mxu0 0.0
        %610 = vmatprep.subr.mxu0 0.0
        %611 = vmatpush2.msra.mxu0 0.0
        %612 = vmatprep.subr.mxu0 0.0
        %613 = vmatpush2.msra.mxu0 0.0
        %614 = vmatprep.mubr.f32.mxu0 0.0
        %615 = vmatmul.mubr.f32.gmra.mxu0 %v548
        %v616 = vpop.f32.mrf.mxu0
        %v617 = vadd.f32 0.0, %v616
        %v618 = vpop.f32.mrf.mxu0
        %619 = vdwg.mxu0
        %v620 = vld [vmem:[%s413] sm:$0xff]
        %v621 = vmul.f32 %v617, %v620
        %v622 = vsel %vm469, %v621, 0.0
        %623 = vadd.xlane.f32.xlu0 %v622
        %v624 = vpop.xlane.xlu0 %623
        %s625 = scalar_lea.vmem %s413, 8 [#allocation5]
        %v626 = vld [vmem:[%s625] sm:$0xff]
        %v627 = vmul.f32 %v617, %v626
        %v628 = vsel %vm469, %v627, 0.0
        %629 = vadd.xlane.f32.xlu0 %v628
        %v630 = vpop.xlane.xlu0 %629
        %s631 = scalar_lea.vmem %s413, 16 [#allocation5]
        %v632 = vld [vmem:[%s631] sm:$0xff]
        %v633 = vmul.f32 %v617, %v632
        %v634 = vsel %vm469, %v633, 0.0
        %635 = vadd.xlane.f32.xlu0 %v634
        %v636 = vpop.xlane.xlu0 %635
        %s637 = scalar_lea.vmem %s413, 24 [#allocation5]
        %v638 = vld [vmem:[%s637] sm:$0xff]
        %v639 = vmul.f32 %v617, %v638
        %v640 = vsel %vm469, %v639, 0.0
        %641 = vadd.xlane.f32.xlu0 %v640
        %v642 = vpop.xlane.xlu0 %641
        %vm643 = vcmask 7168
        %v644 = vsel %vm643, %v624, -inf
        %v645 = vsel %vm643, %v630, -inf
        %v646 = vsel %vm643, %v636, -inf
        %v647 = vsel %vm643, %v642, -inf
        %v648 = vmax.f32 %v644, %v645
        %v649 = vmax.f32 %v646, %v647
        %v650 = vmax.f32 %v648, %v649
        %v651 = vsub.f32 %v624, %v650
        %v652 = vsub.f32 %v630, %v650
        %v653 = vsub.f32 %v636, %v650
        %v654 = vsub.f32 %v642, %v650
        %v655 = vmul.f32 %v651, 1.442695
        %v656 = vpow.pop %v655
        %v657 = vmul.f32 %v652, 1.442695
        %v658 = vpow.pop %v657
        %v659 = vmul.f32 %v653, 1.442695
        %v660 = vpow.pop %v659
        %v661 = vmul.f32 %v654, 1.442695
        %v662 = vpow.pop %v661
        %v663 = vsel %vm643, %v656, 0.0
        %v664 = vsel %vm643, %v658, 0.0
        %v665 = vadd.f32 %v663, %v664
        %v666 = vsel %vm643, %v660, 0.0
        %v667 = vadd.f32 %v665, %v666
        %v668 = vsel %vm643, %v662, 0.0
        %v669 = vadd.f32 %v667, %v668
        %v670 = vrcp.pop %v669
        %672 = vset.pattern.permute.xlu0 0
        %673 = vperm.xlu0 %672, %v656
        %v674 = vpop.permute.xlu0 %673
        %v676 = vmul.f32 %v674, %v620
        %678 = vset.pattern.permute.xlu0 0
        %679 = vperm.xlu0 %678, %v658
        %v680 = vpop.permute.xlu0 %679
        %v682 = vmul.f32 %v680, %v626
        %v683 = vadd.f32 %v676, %v682
        %685 = vset.pattern.permute.xlu0 0
        %686 = vperm.xlu0 %685, %v660
        %v687 = vpop.permute.xlu0 %686
        %v689 = vmul.f32 %v687, %v632
        %v690 = vadd.f32 %v683, %v689
        %692 = vset.pattern.permute.xlu0 0
        %693 = vperm.xlu0 %692, %v662
        %v694 = vpop.permute.xlu0 %693
        %v696 = vmul.f32 %v694, %v638
        %v697 = vadd.f32 %v690, %v696
        %699 = vset.pattern.permute.xlu0 0
        %700 = vperm.xlu0 %699, %v670
        %v701 = vpop.permute.xlu0 %700
        %v703 = vmul.f32 %v697, %v701
        %v704 = vadd.f32 %v703, %v457
        %v705 = vld [vmem:[%s5] sm:$0xff]
        %v706 = vld [vmem:[%s5 + $0x8] sm:$0xff]
        %v707 = vld [vmem:[%s5 + $0x10] sm:$0xff]
        %v708 = vld [vmem:[%s5 + $0x18] sm:$0xff]
        %v710 = vsel %vm469, %v704, 0
        %712 = vmatprep.subr.mxu0 0.0
        %713 = vmatpush1.msra.mxu0 0.0
        %714 = vmatprep.subr.mxu0 0.0
        %715 = vmatpush1.msra.mxu0 0.0
        %716 = vmatprep.subr.mxu0 0.0
        %717 = vmatpush1.msra.mxu0 0.0
        %718 = vmatprep.subr.mxu0 0.0
        %719 = vmatpush1.msra.mxu0 0.0
        %720 = vmatprep.subr.mxu0 0.0
        %721 = vmatpush1.msra.mxu0 0.0
        %722 = vmatprep.subr.mxu0 0.0
        %723 = vmatpush1.msra.mxu0 0.0
        %724 = vmatprep.subr.mxu0 0.0
        %725 = vmatpush1.msra.mxu0 0.0
        %726 = vmatprep.subr.mxu0 0.0
        %727 = vmatpush1.msra.mxu0 0.0
        %728 = vmatprep.subr.mxu0 0.0
        %729 = vmatpush1.msra.mxu0 0.0
        %730 = vmatprep.subr.mxu0 0.0
        %731 = vmatpush1.msra.mxu0 0.0
        %732 = vmatprep.subr.mxu0 0.0
        %733 = vmatpush1.msra.mxu0 0.0
        %734 = vmatprep.subr.mxu0 0.0
        %735 = vmatpush1.msra.mxu0 0.0
        %736 = vmatprep.subr.mxu0 0.0
        %737 = vmatpush1.msra.mxu0 %v708
        %738 = vmatprep.subr.mxu0 0.0
        %739 = vmatpush1.msra.mxu0 %v707
        %740 = vmatprep.subr.mxu0 0.0
        %741 = vmatpush1.msra.mxu0 %v706
        %742 = vmatprep.subr.mxu0 0.0
        %743 = vmatpush1.msra.mxu0 %v705
        %744 = vmatprep.subr.mxu0 0.0
        %745 = vmatpush2.msra.mxu0 0.0
        %746 = vmatprep.subr.mxu0 0.0
        %747 = vmatpush2.msra.mxu0 0.0
        %748 = vmatprep.subr.mxu0 0.0
        %749 = vmatpush2.msra.mxu0 0.0
        %750 = vmatprep.subr.mxu0 0.0
        %751 = vmatpush2.msra.mxu0 0.0
        %752 = vmatprep.subr.mxu0 0.0
        %753 = vmatpush2.msra.mxu0 0.0
        %754 = vmatprep.subr.mxu0 0.0
        %755 = vmatpush2.msra.mxu0 0.0
        %756 = vmatprep.subr.mxu0 0.0
        %757 = vmatpush2.msra.mxu0 0.0
        %758 = vmatprep.subr.mxu0 0.0
        %759 = vmatpush2.msra.mxu0 0.0
        %760 = vmatprep.subr.mxu0 0.0
        %761 = vmatpush2.msra.mxu0 0.0
        %762 = vmatprep.subr.mxu0 0.0
        %763 = vmatpush2.msra.mxu0 0.0
        %764 = vmatprep.subr.mxu0 0.0
        %765 = vmatpush2.msra.mxu0 0.0
        %766 = vmatprep.subr.mxu0 0.0
        %767 = vmatpush2.msra.mxu0 0.0
        %768 = vmatprep.subr.mxu0 0.0
        %769 = vmatpush2.msra.mxu0 0.0
        %770 = vmatprep.subr.mxu0 0.0
        %771 = vmatpush2.msra.mxu0 0.0
        %772 = vmatprep.subr.mxu0 0.0
        %773 = vmatpush2.msra.mxu0 0.0
        %774 = vmatprep.subr.mxu0 0.0
        %775 = vmatpush2.msra.mxu0 0.0
        %776 = vmatprep.mubr.f32.mxu0 0.0
        %777 = vmatmul.mubr.f32.gmra.mxu0 %v710
        %v778 = vpop.f32.mrf.mxu0
        %v779 = vadd.f32 0.0, %v778
        %v780 = vpop.f32.mrf.mxu0
        %781 = vdwg.mxu0
        %v782 = vld [vmem:[#allocation6] sm:$0xff]
        %v783 = vld [vmem:[#allocation6 + $0x8] sm:$0xff]
        %v784 = vld [vmem:[#allocation6 + $0x10] sm:$0xff]
        %v785 = vld [vmem:[#allocation6 + $0x18] sm:$0xff]
        %v786 = vld [vmem:[%s7] sm:$0x1]
        %v788 = vlaneseq
        %v789 = vshrl.u32 %v788, 7
        %v790 = vsub.s32 0, %v789
        %v791 = vrot.slane %v786, %v790
        %v794 = vsel %vm469, %v779, 0
        %796 = vmatprep.subr.mxu0 0.0
        %797 = vmatpush1.msra.mxu0 0.0
        %798 = vmatprep.subr.mxu0 0.0
        %799 = vmatpush1.msra.mxu0 0.0
        %800 = vmatprep.subr.mxu0 0.0
        %801 = vmatpush1.msra.mxu0 0.0
        %802 = vmatprep.subr.mxu0 0.0
        %803 = vmatpush1.msra.mxu0 0.0
        %804 = vmatprep.subr.mxu0 0.0
        %805 = vmatpush1.msra.mxu0 0.0
        %806 = vmatprep.subr.mxu0 0.0
        %807 = vmatpush1.msra.mxu0 0.0
        %808 = vmatprep.subr.mxu0 0.0
        %809 = vmatpush1.msra.mxu0 0.0
        %810 = vmatprep.subr.mxu0 0.0
        %811 = vmatpush1.msra.mxu0 0.0
        %812 = vmatprep.subr.mxu0 0.0
        %813 = vmatpush1.msra.mxu0 0.0
        %814 = vmatprep.subr.mxu0 0.0
        %815 = vmatpush1.msra.mxu0 0.0
        %816 = vmatprep.subr.mxu0 0.0
        %817 = vmatpush1.msra.mxu0 0.0
        %818 = vmatprep.subr.mxu0 0.0
        %819 = vmatpush1.msra.mxu0 0.0
        %820 = vmatprep.subr.mxu0 0.0
        %821 = vmatpush1.msra.mxu0 %v785
        %822 = vmatprep.subr.mxu0 0.0
        %823 = vmatpush1.msra.mxu0 %v784
        %824 = vmatprep.subr.mxu0 0.0
        %825 = vmatpush1.msra.mxu0 %v783
        %826 = vmatprep.subr.mxu0 0.0
        %827 = vmatpush1.msra.mxu0 %v782
        %828 = vmatprep.subr.mxu0 0.0
        %829 = vmatpush2.msra.mxu0 0.0
        %830 = vmatprep.subr.mxu0 0.0
        %831 = vmatpush2.msra.mxu0 0.0
        %832 = vmatprep.subr.mxu0 0.0
        %833 = vmatpush2.msra.mxu0 0.0
        %834 = vmatprep.subr.mxu0 0.0
        %835 = vmatpush2.msra.mxu0 0.0
        %836 = vmatprep.subr.mxu0 0.0
        %837 = vmatpush2.msra.mxu0 0.0
        %838 = vmatprep.subr.mxu0 0.0
        %839 = vmatpush2.msra.mxu0 0.0
        %840 = vmatprep.subr.mxu0 0.0
        %841 = vmatpush2.msra.mxu0 0.0
        %842 = vmatprep.subr.mxu0 0.0
        %843 = vmatpush2.msra.mxu0 0.0
        %844 = vmatprep.subr.mxu0 0.0
        %845 = vmatpush2.msra.mxu0 0.0
        %846 = vmatprep.subr.mxu0 0.0
        %847 = vmatpush2.msra.mxu0 0.0
        %848 = vmatprep.subr.mxu0 0.0
        %849 = vmatpush2.msra.mxu0 0.0
        %850 = vmatprep.subr.mxu0 0.0
        %851 = vmatpush2.msra.mxu0 0.0
        %852 = vmatprep.subr.mxu0 0.0
        %853 = vmatpush2.msra.mxu0 0.0
        %854 = vmatprep.subr.mxu0 0.0
        %855 = vmatpush2.msra.mxu0 0.0
        %856 = vmatprep.subr.mxu0 0.0
        %857 = vmatpush2.msra.mxu0 0.0
        %858 = vmatprep.subr.mxu0 0.0
        %859 = vmatpush2.msra.mxu0 0.0
        %860 = vmatprep.mubr.f32.mxu0 0.0
        %861 = vmatmul.mubr.f32.gmra.mxu0 %v794
        %v862 = vpop.f32.mrf.mxu0
        %v863 = vadd.f32 %v791, %v862
        %v864 = vpop.f32.mrf.mxu0
        %865 = vdwg.mxu0
        %v866 = vmul.f32 %v863, 0.5
        %v867 = vmul.f32 %v863, 0.70710677
        %v868 = verf.f32.pop %v867
        %v869 = vadd.f32 %v868, 1.0
        %v870 = vmul.f32 %v866, %v869
        %v871 = vld [vmem:[%s8] sm:$0xff]
        %v872 = vld [vmem:[%s8 + $0x8] sm:$0xff]
        %v873 = vld [vmem:[%s8 + $0x10] sm:$0xff]
        %v874 = vld [vmem:[%s8 + $0x18] sm:$0xff]
        %v875 = vld [vmem:[%s8 + $0x20] sm:$0xff]
        %v876 = vld [vmem:[%s8 + $0x28] sm:$0xff]
        %v877 = vld [vmem:[%s8 + $0x30] sm:$0xff]
        %v878 = vld [vmem:[%s8 + $0x38] sm:$0xff]
        %v879 = vld [vmem:[%s8 + $0x40] sm:$0xff]
        %v880 = vld [vmem:[%s8 + $0x48] sm:$0xff]
        %v881 = vld [vmem:[%s8 + $0x50] sm:$0xff]
        %v882 = vld [vmem:[%s8 + $0x58] sm:$0xff]
        %v883 = vld [vmem:[%s8 + $0x60] sm:$0xff]
        %v884 = vld [vmem:[%s8 + $0x68] sm:$0xff]
        %v885 = vld [vmem:[%s8 + $0x70] sm:$0xff]
        %v886 = vld [vmem:[%s8 + $0x78] sm:$0xff]
        %v887 = vld [vmem:[%s9] sm:$0x1]
        %v889 = vlaneseq
        %v890 = vshrl.u32 %v889, 7
        %v891 = vsub.s32 0, %v890
        %v892 = vrot.slane %v887, %v891
        %894 = vmatprep.subr.mxu0 0.0
        %895 = vmatpush1.msra.mxu0 %v886
        %896 = vmatprep.subr.mxu0 0.0
        %897 = vmatpush1.msra.mxu0 %v885
        %898 = vmatprep.subr.mxu0 0.0
        %899 = vmatpush1.msra.mxu0 %v884
        %900 = vmatprep.subr.mxu0 0.0
        %901 = vmatpush1.msra.mxu0 %v883
        %902 = vmatprep.subr.mxu0 0.0
        %903 = vmatpush1.msra.mxu0 %v882
        %904 = vmatprep.subr.mxu0 0.0
        %905 = vmatpush1.msra.mxu0 %v881
        %906 = vmatprep.subr.mxu0 0.0
        %907 = vmatpush1.msra.mxu0 %v880
        %908 = vmatprep.subr.mxu0 0.0
        %909 = vmatpush1.msra.mxu0 %v879
        %910 = vmatprep.subr.mxu0 0.0
        %911 = vmatpush1.msra.mxu0 %v878
        %912 = vmatprep.subr.mxu0 0.0
        %913 = vmatpush1.msra.mxu0 %v877
        %914 = vmatprep.subr.mxu0 0.0
        %915 = vmatpush1.msra.mxu0 %v876
        %916 = vmatprep.subr.mxu0 0.0
        %917 = vmatpush1.msra.mxu0 %v875
        %918 = vmatprep.subr.mxu0 0.0
        %919 = vmatpush1.msra.mxu0 %v874
        %920 = vmatprep.subr.mxu0 0.0
        %921 = vmatpush1.msra.mxu0 %v873
        %922 = vmatprep.subr.mxu0 0.0
        %923 = vmatpush1.msra.mxu0 %v872
        %924 = vmatprep.subr.mxu0 0.0
        %925 = vmatpush1.msra.mxu0 %v871
        %926 = vmatprep.subr.mxu0 0.0
        %927 = vmatpush2.msra.mxu0 0.0
        %928 = vmatprep.subr.mxu0 0.0
        %929 = vmatpush2.msra.mxu0 0.0
        %930 = vmatprep.subr.mxu0 0.0
        %931 = vmatpush2.msra.mxu0 0.0
        %932 = vmatprep.subr.mxu0 0.0
        %933 = vmatpush2.msra.mxu0 0.0
        %934 = vmatprep.subr.mxu0 0.0
        %935 = vmatpush2.msra.mxu0 0.0
        %936 = vmatprep.subr.mxu0 0.0
        %937 = vmatpush2.msra.mxu0 0.0
        %938 = vmatprep.subr.mxu0 0.0
        %939 = vmatpush2.msra.mxu0 0.0
        %940 = vmatprep.subr.mxu0 0.0
        %941 = vmatpush2.msra.mxu0 0.0
        %942 = vmatprep.subr.mxu0 0.0
        %943 = vmatpush2.msra.mxu0 0.0
        %944 = vmatprep.subr.mxu0 0.0
        %945 = vmatpush2.msra.mxu0 0.0
        %946 = vmatprep.subr.mxu0 0.0
        %947 = vmatpush2.msra.mxu0 0.0
        %948 = vmatprep.subr.mxu0 0.0
        %949 = vmatpush2.msra.mxu0 0.0
        %950 = vmatprep.subr.mxu0 0.0
        %951 = vmatpush2.msra.mxu0 0.0
        %952 = vmatprep.subr.mxu0 0.0
        %953 = vmatpush2.msra.mxu0 0.0
        %954 = vmatprep.subr.mxu0 0.0
        %955 = vmatpush2.msra.mxu0 0.0
        %956 = vmatprep.subr.mxu0 0.0
        %957 = vmatpush2.msra.mxu0 0.0
        %958 = vmatprep.mubr.f32.mxu0 0.0
        %959 = vmatmul.mubr.f32.gmra.mxu0 %v870
        %v960 = vpop.f32.mrf.mxu0
        %v961 = vadd.f32 %v892, %v960
        %v962 = vpop.f32.mrf.mxu0
        %963 = vdwg.mxu0
        %964 = vst.msk [vmem:[%s456] sm:$0xff] %vm469, %v961
        %s965 = sand.u32 %s256, 1
        %s966 = scalar_lea.sflag [#allocation4], %s965
        %s967 = sand.u32 %s256, 1
        %s968 = smul.addr %s967, 8
        %s969 = scalar_lea.vmem [#allocation8], %s968
        // Predicated region
        $region107: #{tpu_custom_call.1} parent=93 // pred_check
          %p970 = pneg %p266
        $region108: #{tpu_custom_call.1} parent=93 // pred_check_branch
          %972 = sbr.rel (%p970) target = $region110
        $region109: #{tpu_custom_call.1} parent=93 // pred_region
          %s974 = ssub.s32 128, 128
          %975 = vsyncadd %s966, %s974
          %s976 = smul.addr %s28, 128
          %s977 = scalar_lea.hbm %s10, %s976
          %s979 = sshll.u32 %s969, 4
          %s980 = int_to_ptr.vmem [resolvable:$true] %s979
          %982 = dma.vmem_to_hbm [thread:$0]  %s980, 128, %s977, %s966
        $region110: #{tpu_custom_call.1} parent=93 // pred_fallthru
          _
      $region94: #{tpu_custom_call.1} parent=5 // pred_fallthru
        _
      %p983 = scmp.le.s32.totalorder 2, %s23
      // Predicated region
      $region111: #{tpu_custom_call.1} parent=5 // pred_check
        %p984 = pneg %p983
      $region112: #{tpu_custom_call.1} parent=5 // pred_check_branch
        %986 = sbr.rel (%p984) target = $region114
      $region113: #{tpu_custom_call.1} parent=5 // pred_region
        %s987 = ssub.s32 %s23, 2
        // Predicated region
        $region115: #{tpu_custom_call.1} parent=113 // pred_check
          %p988 = pneg %p272
        $region116: #{tpu_custom_call.1} parent=113 // pred_check_branch
          %990 = sbr.rel (%p988) target = $region118
        $region117: #{tpu_custom_call.1} parent=113 // pred_region
          %s991 = sand.u32 %s257, 1
          %s992 = scalar_lea.sflag [#allocation4], %s991
          %s993 = sand.u32 %s257, 1
          %s994 = smul.addr %s993, 8
          %s995 = scalar_lea.vmem [#allocation8], %s994
          %996 = dma.done %s992, 128
        $region118: #{tpu_custom_call.1} parent=113 // pred_fallthru
          _
      $region114: #{tpu_custom_call.1} parent=5 // pred_fallthru
        _
    $region6: #{tpu_custom_call.1} parent=1 // loop_footer
      %s27 = sadd.s32 1, %s23
    $region7: #{tpu_custom_call.1} parent=1 // loop_footer_branch
      %22 = sbr.rel target = $region3
    $region8: #{tpu_custom_call.1} parent=1 // loop_exit
      _
    %997 = vsyncpa [#allocation3], 1
    %s998 = scalar_lea.sflag [#allocation3], 1
    %999 = vsyncpa %s998, 1
    %1000 = vsyncpa [#allocation7], 1
    %1001 = vsyncpa [#allocation4], 1
    %s1002 = scalar_lea.sflag [#allocation4], 1
    %1003 = vsyncpa %s1002, 1

// kernel: tpu_custom_call.1
$region0: #{tpu_custom_call.1}
  #allocation0 [shape = 'u32[]', space=smem, size = 0x4, offset = 0x4, fixed_abs, tag = 'smem constant byte address 0x4 - core index']
  #allocation1 [shape = 'u32[144,128]{1,0:T(1,128)}', space=vmem, size = 0x12000, scoped, tag = 'internal scratch']
  %s0 = inlined_call_operand.hbm [shape: f32[16,32], index: 0, kind: input, shape index: {}]
  %s1 = inlined_call_operand.vmem [shape: f32[4,16,32], index: 1, kind: input, shape index: {}]
  %s2 = inlined_call_operand.vmem [shape: f32[32,32], index: 2, kind: input, shape index: {}]
  %s3 = inlined_call_operand.vmem [shape: f32[1,32], index: 3, kind: input, shape index: {}]
  %s4 = inlined_call_operand.vmem [shape: f32[32,32], index: 4, kind: input, shape index: {}]
  %s5 = inlined_call_operand.vmem [shape: f32[32,32], index: 5, kind: input, shape index: {}]
  %s6 = inlined_call_operand.hbm [shape: f32[32,128], index: 6, kind: input, shape index: {}]
  %s7 = inlined_call_operand.vmem [shape: f32[1,128], index: 7, kind: input, shape index: {}]
  %s8 = inlined_call_operand.vmem [shape: f32[128,32], index: 8, kind: input, shape index: {}]
  %s9 = inlined_call_operand.vmem [shape: f32[1,32], index: 9, kind: input, shape index: {}]
  %s10 = inlined_call_operand.hbm [shape: f32[16,32], index: 10, kind: output, shape index: {}]
  %s11 = sld [smem:[#allocation0]]
  $region119: #{tpu_custom_call.1} parent=0
    _
  %s13 = ssub.s32 1, %s11
  %s14 = scalar_select 0, %s13, %s11
  $region1: #{tpu_custom_call.1} parent=0
    #allocation2 [shape = 'u8[8192]{0}', space=vmem, size = 0x2000, scoped, tag = 'input window, operand 0']
    #allocation3 [shape = 's32[2]{0}', space=sflag, size = 0x8, scoped, tag = 'scoped memory for tpu_custom_call.1']
    #allocation4 [shape = 's32[2]{0}', space=sflag, size = 0x8, scoped, tag = 'scoped memory for tpu_custom_call.1']
    #allocation5 [shape = 'u8[32768]{0}', space=vmem, size = 0x8000, scoped, tag = 'input window, operand 1']
    #allocation6 [shape = 'u8[16384]{0}', space=vmem, size = 0x4000, scoped, tag = 'input window, operand 6, single buffered']
    #allocation7 [shape = 's32[1]{0}', space=sflag, size = 0x4, scoped, tag = 'scoped memory for tpu_custom_call.1']
    #allocation8 [shape = 'u8[8192]{0}', space=vmem, size = 0x2000, scoped, tag = 'output window, operand 0']
    %15 = vsyncpa [#allocation3], 0
    %s16 = scalar_lea.sflag [#allocation3], 1
    %17 = vsyncpa %s16, 0
    %18 = vsyncpa [#allocation7], 0
    %19 = vsyncpa [#allocation4], 0
    %s20 = scalar_lea.sflag [#allocation4], 1
    %21 = vsyncpa %s20, 0
    loop: start=0, step=1, limit=4
    $region2: #{tpu_custom_call.1} parent=1 // loop_pre_header
      _
    $region3: #{tpu_custom_call.1} parent=1 // loop_header
      %s23 = sphi 0, %s27
      %p24 = scmp.ge.s32.totalorder %s23, 4
      %s33 = sphi 0, %s35
      %s36 = sphi 0, %s33
      %s37 = sphi 0, %s36
      %s53 = sphi 0, %s37
      %s59 = sphi 0, %s61
      %s62 = sphi 0, %s59
      %s63 = sphi 0, %s62
      %s79 = sphi 0, %s63
      %s83 = sphi 0, %s83
      %s85 = sphi 0, %s83
      %s86 = sphi 0, %s85
      %s100 = sphi 0, %s86
      %s104 = sphi 0, %s104
      %s106 = sphi 0, %s104
      %s107 = sphi 0, %s106
      %s121 = sphi 0, %s107
      %s125 = sphi 0, %s125
      %s127 = sphi 0, %s125
      %s128 = sphi 0, %s127
      %s142 = sphi 0, %s128
      %s146 = sphi 0, %s146
      %s148 = sphi 0, %s146
      %s149 = sphi 0, %s148
      %s163 = sphi 0, %s149
      %s167 = sphi 0, %s167
      %s169 = sphi 0, %s167
      %s170 = sphi 0, %s169
      %s184 = sphi 0, %s170
      %s188 = sphi 0, %s188
      %s190 = sphi 0, %s188
      %s191 = sphi 0, %s190
      %s205 = sphi 0, %s191
      %s209 = sphi 0, %s209
      %s211 = sphi 0, %s209
      %s212 = sphi 0, %s211
      %s226 = sphi 0, %s212
      %s230 = sphi 0, %s230
      %s232 = sphi 0, %s230
      %s233 = sphi 0, %s232
      %s247 = sphi 0, %s233
      %s253 = sphi 0, %s255
      %s256 = sphi 0, %s253
      %s257 = sphi 0, %s256
      %s273 = sphi 0, %s257
    $region4: #{tpu_custom_call.1} parent=1 // loop_header_branch
      %26 = sbr.rel (%p24) target = $region8
    $region5: #{tpu_custom_call.1} parent=1 // loop_body
      %s28 = ssub.s32 %s23, 1
      %s29 = ssub.s32 %s23, 2
      %s30 = sadd.s32 %s23, 1
      %s31 = ssub.s32 %s23, %s30
      %p32 = scmp.eq.s32.totalorder %s31, 0
      %s34 = sadd.s32 %s33, 1
      %s35 = scalar_select %p32, %s33, %s34
      %p38 = pneg %p32
      %p39 = scmp.eq.s32.totalorder %s23, 1
      %p40 = por %p38, %p39
      %p41 = scmp.ne.s32.totalorder %s33, %s36
      %p42 = scmp.eq.s32.totalorder %s23, 0
      %p43 = por %p41, %p42
      %p44 = scmp.ne.s32.totalorder %s33, %s36
      %p45 = scmp.eq.s32.totalorder %s28, 1
      %p46 = por %p44, %p45
      %p47 = scmp.ne.s32.totalorder %s36, %s37
      %p48 = scmp.eq.s32.totalorder %s28, 0
      %p49 = por %p47, %p48
      %p50 = scmp.ne.s32.totalorder %s36, %s37
      %p51 = scmp.eq.s32.totalorder %s29, 1
      %p52 = por %p50, %p51
      %p54 = scmp.ne.s32.totalorder %s37, %s53
      %p55 = scmp.eq.s32.totalorder %s29, 0
      %p56 = por %p54, %p55
      %s57 = ssub.s32 %s23, %s30
      %p58 = scmp.eq.s32.totalorder %s57, 0
      %s60 = sadd.s32 %s59, 1
      %s61 = scalar_select %p58, %s59, %s60
      %p64 = pneg %p58
      %p65 = scmp.eq.s32.totalorder %s23, 1
      %p66 = por %p64, %p65
      %p67 = scmp.ne.s32.totalorder %s59, %s62
      %p68 = scmp.eq.s32.totalorder %s23, 0
      %p69 = por %p67, %p68
      %p70 = scmp.ne.s32.totalorder %s59, %s62
      %p71 = scmp.eq.s32.totalorder %s28, 1
      %p72 = por %p70, %p71
      %p73 = scmp.ne.s32.totalorder %s62, %s63
      %p74 = scmp.eq.s32.totalorder %s28, 0
      %p75 = por %p73, %p74
      %p76 = scmp.ne.s32.totalorder %s62, %s63
      %p77 = scmp.eq.s32.totalorder %s29, 1
      %p78 = por %p76, %p77
      %p80 = scmp.ne.s32.totalorder %s63, %s79
      %p81 = scmp.eq.s32.totalorder %s29, 0
      %p82 = por %p80, %p81
      %s84 = sadd.s32 %s83, 1
      %p87 = scmp.eq.s32.totalorder %s23, 1
      %p88 = scmp.ne.s32.totalorder %s83, %s85
      %p89 = scmp.eq.s32.totalorder %s23, 0
      %p90 = por %p88, %p89
      %p91 = scmp.ne.s32.totalorder %s83, %s85
      %p92 = scmp.eq.s32.totalorder %s28, 1
      %p93 = por %p91, %p92
      %p94 = scmp.ne.s32.totalorder %s85, %s86
      %p95 = scmp.eq.s32.totalorder %s28, 0
      %p96 = por %p94, %p95
      %p97 = scmp.ne.s32.totalorder %s85, %s86
      %p98 = scmp.eq.s32.totalorder %s29, 1
      %p99 = por %p97, %p98
      %p101 = scmp.ne.s32.totalorder %s86, %s100
      %p102 = scmp.eq.s32.totalorder %s29, 0
      %p103 = por %p101, %p102
      %s105 = sadd.s32 %s104, 1
      %p108 = scmp.eq.s32.totalorder %s23, 1
      %p109 = scmp.ne.s32.totalorder %s104, %s106
      %p110 = scmp.eq.s32.totalorder %s23, 0
      %p111 = por %p109, %p110
      %p112 = scmp.ne.s32.totalorder %s104, %s106
      %p113 = scmp.eq.s32.totalorder %s28, 1
      %p114 = por %p112, %p113
      %p115 = scmp.ne.s32.totalorder %s106, %s107
      %p116 = scmp.eq.s32.totalorder %s28, 0
      %p117 = por %p115, %p116
      %p118 = scmp.ne.s32.totalorder %s106, %s107
      %p119 = scmp.eq.s32.totalorder %s29, 1
      %p120 = por %p118, %p119
      %p122 = scmp.ne.s32.totalorder %s107, %s121
      %p123 = scmp.eq.s32.totalorder %s29, 0
      %p124 = por %p122, %p123
      %s126 = sadd.s32 %s125, 1
      %p129 = scmp.eq.s32.totalorder %s23, 1
      %p130 = scmp.ne.s32.totalorder %s125, %s127
      %p131 = scmp.eq.s32.totalorder %s23, 0
      %p132 = por %p130, %p131
      %p133 = scmp.ne.s32.totalorder %s125, %s127
      %p134 = scmp.eq.s32.totalorder %s28, 1
      %p135 = por %p133, %p134
      %p136 = scmp.ne.s32.totalorder %s127, %s128
      %p137 = scmp.eq.s32.totalorder %s28, 0
      %p138 = por %p136, %p137
      %p139 = scmp.ne.s32.totalorder %s127, %s128
      %p140 = scmp.eq.s32.totalorder %s29, 1
      %p141 = por %p139, %p140
      %p143 = scmp.ne.s32.totalorder %s128, %s142
      %p144 = scmp.eq.s32.totalorder %s29, 0
      %p145 = por %p143, %p144
      %s147 = sadd.s32 %s146, 1
      %p150 = scmp.eq.s32.totalorder %s23, 1
      %p151 = scmp.ne.s32.totalorder %s146, %s148
      %p152 = scmp.eq.s32.totalorder %s23, 0
      %p153 = por %p151, %p152
      %p154 = scmp.ne.s32.totalorder %s146, %s148
      %p155 = scmp.eq.s32.totalorder %s28, 1
      %p156 = por %p154, %p155
      %p157 = scmp.ne.s32.totalorder %s148, %s149
      %p158 = scmp.eq.s32.totalorder %s28, 0
      %p159 = por %p157, %p158
      %p160 = scmp.ne.s32.totalorder %s148, %s149
      %p161 = scmp.eq.s32.totalorder %s29, 1
      %p162 = por %p160, %p161
      %p164 = scmp.ne.s32.totalorder %s149, %s163
      %p165 = scmp.eq.s32.totalorder %s29, 0
      %p166 = por %p164, %p165
      %s168 = sadd.s32 %s167, 1
      %p171 = scmp.eq.s32.totalorder %s23, 1
      %p172 = scmp.ne.s32.totalorder %s167, %s169
      %p173 = scmp.eq.s32.totalorder %s23, 0
      %p174 = por %p172, %p173
      %p175 = scmp.ne.s32.totalorder %s167, %s169
      %p176 = scmp.eq.s32.totalorder %s28, 1
      %p177 = por %p175, %p176
      %p178 = scmp.ne.s32.totalorder %s169, %s170
      %p179 = scmp.eq.s32.totalorder %s28, 0
      %p180 = por %p178, %p179
      %p181 = scmp.ne.s32.totalorder %s169, %s170
      %p182 = scmp.eq.s32.totalorder %s29, 1
      %p183 = por %p181, %p182
      %p185 = scmp.ne.s32.totalorder %s170, %s184
      %p186 = scmp.eq.s32.totalorder %s29, 0
      %p187 = por %p185, %p186
      %s189 = sadd.s32 %s188, 1
      %p192 = scmp.eq.s32.totalorder %s23, 1
      %p193 = scmp.ne.s32.totalorder %s188, %s190
      %p194 = scmp.eq.s32.totalorder %s23, 0
      %p195 = por %p193, %p194
      %p196 = scmp.ne.s32.totalorder %s188, %s190
      %p197 = scmp.eq.s32.totalorder %s28, 1
      %p198 = por %p196, %p197
      %p199 = scmp.ne.s32.totalorder %s190, %s191
      %p200 = scmp.eq.s32.totalorder %s28, 0
      %p201 = por %p199, %p200
      %p202 = scmp.ne.s32.totalorder %s190, %s191
      %p203 = scmp.eq.s32.totalorder %s29, 1
      %p204 = por %p202, %p203
      %p206 = scmp.ne.s32.totalorder %s191, %s205
      %p207 = scmp.eq.s32.totalorder %s29, 0
      %p208 = por %p206, %p207
      %s210 = sadd.s32 %s209, 1
      %p213 = scmp.eq.s32.totalorder %s23, 1
      %p214 = scmp.ne.s32.totalorder %s209, %s211
      %p215 = scmp.eq.s32.totalorder %s23, 0
      %p216 = por %p214, %p215
      %p217 = scmp.ne.s32.totalorder %s209, %s211
      %p218 = scmp.eq.s32.totalorder %s28, 1
      %p219 = por %p217, %p218
      %p220 = scmp.ne.s32.totalorder %s211, %s212
      %p221 = scmp.eq.s32.totalorder %s28, 0
      %p222 = por %p220, %p221
      %p223 = scmp.ne.s32.totalorder %s211, %s212
      %p224 = scmp.eq.s32.totalorder %s29, 1
      %p225 = por %p223, %p224
      %p227 = scmp.ne.s32.totalorder %s212, %s226
      %p228 = scmp.eq.s32.totalorder %s29, 0
      %p229 = por %p227, %p228
      %s231 = sadd.s32 %s230, 1
      %p234 = scmp.eq.s32.totalorder %s23, 1
      %p235 = scmp.ne.s32.totalorder %s230, %s232
      %p236 = scmp.eq.s32.totalorder %s23, 0
      %p237 = por %p235, %p236
      %p238 = scmp.ne.s32.totalorder %s230, %s232
      %p239 = scmp.eq.s32.totalorder %s28, 1
      %p240 = por %p238, %p239
      %p241 = scmp.ne.s32.totalorder %s232, %s233
      %p242 = scmp.eq.s32.totalorder %s28, 0
      %p243 = por %p241, %p242
      %p244 = scmp.ne.s32.totalorder %s232, %s233
      %p245 = scmp.eq.s32.totalorder %s29, 1
      %p246 = por %p244, %p245
      %p248 = scmp.ne.s32.totalorder %s233, %s247
      %p249 = scmp.eq.s32.totalorder %s29, 0
      %p250 = por %p248, %p249
      %s251 = ssub.s32 %s23, %s30
      %p252 = scmp.eq.s32.totalorder %s251, 0
      %s254 = sadd.s32 %s253, 1
      %s255 = scalar_select %p252, %s253, %s254
      %p258 = pneg %p252
      %p259 = scmp.eq.s32.totalorder %s23, 1
      %p260 = por %p258, %p259
      %p261 = scmp.ne.s32.totalorder %s253, %s256
      %p262 = scmp.eq.s32.totalorder %s23, 0
      %p263 = por %p261, %p262
      %p264 = scmp.ne.s32.totalorder %s253, %s256
      %p265 = scmp.eq.s32.totalorder %s28, 1
      %p266 = por %p264, %p265
      %p267 = scmp.ne.s32.totalorder %s256, %s257
      %p268 = scmp.eq.s32.totalorder %s28, 0
      %p269 = por %p267, %p268
      %p270 = scmp.ne.s32.totalorder %s256, %s257
      %p271 = scmp.eq.s32.totalorder %s29, 1
      %p272 = por %p270, %p271
      %p274 = scmp.ne.s32.totalorder %s257, %s273
      %p275 = scmp.eq.s32.totalorder %s29, 0
      %p276 = por %p274, %p275
      %p277 = scmp.le.s32.totalorder 1, %s23
      %p278 = scmp.lt.s32.totalorder %s23, 3
      %p279 = pnand %p277, %p278
      %p280 = pneg %p279
      // Predicated region
      $region9: #{tpu_custom_call.1} parent=5 // pred_check
        _
      $region10: #{tpu_custom_call.1} parent=5 // pred_check_branch
        %282 = sbr.rel (%p279) target = $region12
      $region11: #{tpu_custom_call.1} parent=5 // pred_region
        %s283 = ssub.s32 %s23, 1
        // Predicated region
        $region13: #{tpu_custom_call.1} parent=11 // pred_check
          %p284 = pneg %p96
        $region14: #{tpu_custom_call.1} parent=11 // pred_check_branch
          %286 = sbr.rel (%p284) target = $region16
        $region15: #{tpu_custom_call.1} parent=11 // pred_region
          _
        $region16: #{tpu_custom_call.1} parent=11 // pred_fallthru
          _
        // Predicated region
        $region17: #{tpu_custom_call.1} parent=11 // pred_check
          %p287 = pneg %p117
        $region18: #{tpu_custom_call.1} parent=11 // pred_check_branch
          %289 = sbr.rel (%p287) target = $region20
        $region19: #{tpu_custom_call.1} parent=11 // pred_region
          _
        $region20: #{tpu_custom_call.1} parent=11 // pred_fallthru
          _
        // Predicated region
        $region21: #{tpu_custom_call.1} parent=11 // pred_check
          %p290 = pneg %p138
        $region22: #{tpu_custom_call.1} parent=11 // pred_check_branch
          %292 = sbr.rel (%p290) target = $region24
        $region23: #{tpu_custom_call.1} parent=11 // pred_region
          _
        $region24: #{tpu_custom_call.1} parent=11 // pred_fallthru
          _
        // Predicated region
        $region25: #{tpu_custom_call.1} parent=11 // pred_check
          %p293 = pneg %p159
        $region26: #{tpu_custom_call.1} parent=11 // pred_check_branch
          %295 = sbr.rel (%p293) target = $region28
        $region27: #{tpu_custom_call.1} parent=11 // pred_region
          _
        $region28: #{tpu_custom_call.1} parent=11 // pred_fallthru
          _
        // Predicated region
        $region29: #{tpu_custom_call.1} parent=11 // pred_check
          %p296 = pneg %p180
        $region30: #{tpu_custom_call.1} parent=11 // pred_check_branch
          %298 = sbr.rel (%p296) target = $region32
        $region31: #{tpu_custom_call.1} parent=11 // pred_region
          %s300 = ssub.s32 512, 512
          %301 = vsyncadd [#allocation7], %s300
          %s302 = sshll.u32 [#allocation6], 4
          %s303 = int_to_ptr.vmem [resolvable:$true] %s302
          %308 = dma.hbm_to_vmem [thread:$0]  %s6, 512, %s303, [#allocation7], 128, 128, 8
        $region32: #{tpu_custom_call.1} parent=11 // pred_fallthru
          _
        // Predicated region
        $region33: #{tpu_custom_call.1} parent=11 // pred_check
          %p309 = pneg %p201
        $region34: #{tpu_custom_call.1} parent=11 // pred_check_branch
          %311 = sbr.rel (%p309) target = $region36
        $region35: #{tpu_custom_call.1} parent=11 // pred_region
          _
        $region36: #{tpu_custom_call.1} parent=11 // pred_fallthru
          _
        // Predicated region
        $region37: #{tpu_custom_call.1} parent=11 // pred_check
          %p312 = pneg %p222
        $region38: #{tpu_custom_call.1} parent=11 // pred_check_branch
          %314 = sbr.rel (%p312) target = $region40
        $region39: #{tpu_custom_call.1} parent=11 // pred_region
          _
        $region40: #{tpu_custom_call.1} parent=11 // pred_fallthru
          _
        // Predicated region
        $region41: #{tpu_custom_call.1} parent=11 // pred_check
          %p315 = pneg %p243
        $region42: #{tpu_custom_call.1} parent=11 // pred_check_branch
          %317 = sbr.rel (%p315) target = $region44
        $region43: #{tpu_custom_call.1} parent=11 // pred_region
          _
        $region44: #{tpu_custom_call.1} parent=11 // pred_fallthru
          _
      $region12: #{tpu_custom_call.1} parent=5 // pred_fallthru
        _
      %p318 = scmp.lt.s32.totalorder %s23, 2
      // Predicated region
      $region45: #{tpu_custom_call.1} parent=5 // pred_check
        %p319 = pneg %p318
      $region46: #{tpu_custom_call.1} parent=5 // pred_check_branch
        %321 = sbr.rel (%p319) target = $region48
      $region47: #{tpu_custom_call.1} parent=5 // pred_region
        // Predicated region
        $region49: #{tpu_custom_call.1} parent=47 // pred_check
          %p322 = pneg %p43
        $region50: #{tpu_custom_call.1} parent=47 // pred_check_branch
          %324 = sbr.rel (%p322) target = $region52
        $region51: #{tpu_custom_call.1} parent=47 // pred_region
          %s325 = sand.u32 %s33, 1
          %s326 = scalar_lea.sflag [#allocation3], %s325
          %s327 = sand.u32 %s33, 1
          %s328 = smul.addr %s327, 8
          %s329 = scalar_lea.vmem [#allocation2], %s328
          %s331 = ssub.s32 128, 128
          %332 = vsyncadd %s326, %s331
          %s333 = smul.addr %s23, 128
          %s334 = scalar_lea.hbm %s0, %s333
          %s336 = sshll.u32 %s329, 4
          %s337 = int_to_ptr.vmem [resolvable:$true] %s336
          %339 = dma.hbm_to_vmem [thread:$0]  %s334, 128, %s337, %s326
        $region52: #{tpu_custom_call.1} parent=47 // pred_fallthru
          _
        // Predicated region
        $region53: #{tpu_custom_call.1} parent=47 // pred_check
          %p340 = pneg %p69
        $region54: #{tpu_custom_call.1} parent=47 // pred_check_branch
          %342 = sbr.rel (%p340) target = $region56
        $region55: #{tpu_custom_call.1} parent=47 // pred_region
          %s343 = sand.u32 %s59, 1
          %s344 = sand.u32 %s59, 1
          %s345 = smul.addr %s344, 32
          %s346 = scalar_lea.vmem [#allocation5], %s345
          %s347 = smul.addr %s23, 8
          %s348 = scalar_lea.vmem %s1, %s347
          // Predicated region
          $region57: #{tpu_custom_call.1} parent=55 // pred_check
            _
          $region58: #{tpu_custom_call.1} parent=55 // pred_check_branch
            %350 = sbr.rel (0) target = $region60
          $region59: #{tpu_custom_call.1} parent=55 // pred_region
            // Predicated region
            $region61: #{tpu_custom_call.1} parent=59 // pred_check
              _
            $region62: #{tpu_custom_call.1} parent=59 // pred_check_branch
              %352 = sbr.rel (0) target = $region64
            $region63: #{tpu_custom_call.1} parent=59 // pred_region
              // Predicated region
              $region76: #{tpu_custom_call.1} parent=63 // pred_check
                _
              $region77: #{tpu_custom_call.1} parent=63 // pred_check_branch
                %374 = sbr.rel (0) target = $region79
              $region78: #{tpu_custom_call.1} parent=63 // pred_region
                loop: start=0, step=1, limit=1
                $region80: #{tpu_custom_call.1} parent=78 // loop_pre_header
                  _
                $region81: #{tpu_custom_call.1} parent=78 // loop_header
                  %s376 = sphi 0, %s380
                  %p377 = scmp.ge.s32.totalorder %s376, 1
                  %s381 = sphi %s348, %s348
                  %s382 = sphi %s346, %s346
                $region82: #{tpu_custom_call.1} parent=78 // loop_header_branch
                  %379 = sbr.rel (%p377) target = $region86
                $region83: #{tpu_custom_call.1} parent=78 // loop_body
                  %v383 = vld [vmem:[%s381] sm:$0xff]
                  %384 = vst [vmem:[%s382] sm:$0xff] %v383
                  %v385 = vld [vmem:[%s381 + $0x10] sm:$0xff]
                  %386 = vst [vmem:[%s382 + $0x8] sm:$0xff] %v385
                  %v387 = vld [vmem:[%s381 + $0x20] sm:$0xff]
                  %388 = vst [vmem:[%s382 + $0x10] sm:$0xff] %v387
                  %v389 = vld [vmem:[%s381 + $0x30] sm:$0xff]
                  %390 = vst [vmem:[%s382 + $0x18] sm:$0xff] %v389
                $region84: #{tpu_custom_call.1} parent=78 // loop_footer
                  %s380 = sadd.s32 1, %s376
                $region85: #{tpu_custom_call.1} parent=78 // loop_footer_branch
                  %375 = sbr.rel target = $region81
                $region86: #{tpu_custom_call.1} parent=78 // loop_exit
                  _
              $region79: #{tpu_custom_call.1} parent=63 // pred_fallthru
                _
              // Predicated region
              $region87: #{tpu_custom_call.1} parent=63 // pred_check
                _
              $region88: #{tpu_custom_call.1} parent=63 // pred_check_branch
                %392 = sbr.rel target = $region90
              $region89: #{tpu_custom_call.1} parent=63 // pred_region
                _
              $region90: #{tpu_custom_call.1} parent=63 // pred_fallthru
                _
            $region64: #{tpu_custom_call.1} parent=59 // pred_fallthru
              _
            // Predicated region
            $region65: #{tpu_custom_call.1} parent=59 // pred_check
              _
            $region66: #{tpu_custom_call.1} parent=59 // pred_check_branch
              %354 = sbr.rel target = $region68
            $region67: #{tpu_custom_call.1} parent=59 // pred_region
              %s356 = ssub.s32 256, 1
              loop: start=0, step=1, limit=1
              $region69: #{tpu_custom_call.1} parent=67 // loop_pre_header
                _
              $region70: #{tpu_custom_call.1} parent=67 // loop_header
                %s358 = sphi 0, %s362
                %p359 = scmp.ge.s32.totalorder %s358, 1
                %s363 = sphi %s348, %s348
                %s364 = sphi %s346, %s346
              $region71: #{tpu_custom_call.1} parent=67 // loop_header_branch
                %361 = sbr.rel (%p359) target = $region75
              $region72: #{tpu_custom_call.1} parent=67 // loop_body
                %v365 = vld [vmem:[%s363] sm:%s356]
                %366 = vst [vmem:[%s364] sm:%s356] %v365
                %v367 = vld [vmem:[%s363 + $0x10] sm:%s356]
                %368 = vst [vmem:[%s364 + $0x8] sm:%s356] %v367
                %v369 = vld [vmem:[%s363 + $0x20] sm:%s356]
                %370 = vst [vmem:[%s364 + $0x10] sm:%s356] %v369
                %v371 = vld [vmem:[%s363 + $0x30] sm:%s356]
                %372 = vst [vmem:[%s364 + $0x18] sm:%s356] %v371
              $region73: #{tpu_custom_call.1} parent=67 // loop_footer
                %s362 = sadd.s32 1, %s358
              $region74: #{tpu_custom_call.1} parent=67 // loop_footer_branch
                %357 = sbr.rel target = $region70
              $region75: #{tpu_custom_call.1} parent=67 // loop_exit
                _
            $region68: #{tpu_custom_call.1} parent=59 // pred_fallthru
              _
          $region60: #{tpu_custom_call.1} parent=55 // pred_fallthru
            _
          %393 = vnop
        $region56: #{tpu_custom_call.1} parent=47 // pred_fallthru
          _
      $region48: #{tpu_custom_call.1} parent=5 // pred_fallthru
        _
      %p394 = scmp.le.s32.totalorder 1, %s23
      %p395 = scmp.lt.s32.totalorder %s23, 3
      %p396 = pnand %p394, %p395
      %p397 = pneg %p396
      // Predicated region
      $region91: #{tpu_custom_call.1} parent=5 // pred_check
        _
      $region92: #{tpu_custom_call.1} parent=5 // pred_check_branch
        %399 = sbr.rel (%p396) target = $region94
      $region93: #{tpu_custom_call.1} parent=5 // pred_region
        %s400 = ssub.s32 %s23, 1
        %s401 = sand.u32 %s36, 1
        %s402 = scalar_lea.sflag [#allocation3], %s401
        %s403 = sand.u32 %s36, 1
        %s404 = smul.addr %s403, 8
        %s405 = scalar_lea.vmem [#allocation2], %s404
        // Predicated region
        $region95: #{tpu_custom_call.1} parent=93 // pred_check
          %p406 = pneg %p49
        $region96: #{tpu_custom_call.1} parent=93 // pred_check_branch
          %408 = sbr.rel (%p406) target = $region98
        $region97: #{tpu_custom_call.1} parent=93 // pred_region
          %409 = dma.done %s402, 128
        $region98: #{tpu_custom_call.1} parent=93 // pred_fallthru
          _
        %s410 = sand.u32 %s62, 1
        %s411 = sand.u32 %s62, 1
        %s412 = smul.addr %s411, 32
        %s413 = scalar_lea.vmem [#allocation5], %s412
        // Predicated region
        $region99: #{tpu_custom_call.1} parent=93 // pred_check
          %p414 = pneg %p75
        $region100: #{tpu_custom_call.1} parent=93 // pred_check_branch
          %416 = sbr.rel (%p414) target = $region102
        $region101: #{tpu_custom_call.1} parent=93 // pred_region
          _
        $region102: #{tpu_custom_call.1} parent=93 // pred_fallthru
          _
        // Predicated region
        $region103: #{tpu_custom_call.1} parent=93 // pred_check
          %p417 = pneg %p180
        $region104: #{tpu_custom_call.1} parent=93 // pred_check_branch
          %419 = sbr.rel (%p417) target = $region106
        $region105: #{tpu_custom_call.1} parent=93 // pred_region
          %420 = dma.done [#allocation7], 512
        $region106: #{tpu_custom_call.1} parent=93 // pred_fallthru
          _
        %s421 = sand.u32 %s36, 1
        %s422 = scalar_lea.sflag [#allocation3], %s421
        %s423 = sand.u32 %s36, 1
        %s424 = smul.addr %s423, 8
        %s425 = scalar_lea.vmem [#allocation2], %s424
        %p426 = pneg %p49
        %p427 = pneg %p46
        %s428 = sand.u32 %s62, 1
        %s429 = sand.u32 %s62, 1
        %s430 = smul.addr %s429, 32
        %s431 = scalar_lea.vmem [#allocation5], %s430
        %p432 = pneg %p75
        %p433 = pneg %p72
        %p434 = pneg %p96
        %p435 = pneg %p93
        %p436 = pneg %p117
        %p437 = pneg %p114
        %p438 = pneg %p138
        %p439 = pneg %p135
        %p440 = pneg %p159
        %p441 = pneg %p156
        %p442 = pneg %p180
        %p443 = pneg %p177
        %p444 = pneg %p201
        %p445 = pneg %p198
        %p446 = pneg %p222
        %p447 = pneg %p219
        %p448 = pneg %p243
        %p449 = pneg %p240
        %p450 = pneg %p269
        %p451 = pneg %p266
        %s452 = sand.u32 %s256, 1
        %s453 = scalar_lea.sflag [#allocation4], %s452
        %s454 = sand.u32 %s256, 1
        %s455 = smul.addr %s454, 8
        %s456 = scalar_lea.vmem [#allocation8], %s455
        %v457 = vld [vmem:[%s405] sm:$0xff]
        %v458 = vld [vmem:[%s2] sm:$0xff]
        %v459 = vld [vmem:[%s2 + $0x8] sm:$0xff]
        %v460 = vld [vmem:[%s2 + $0x10] sm:$0xff]
        %v461 = vld [vmem:[%s2 + $0x18] sm:$0xff]
        %v462 = vld [vmem:[%s3] sm:$0x1]
        %v464 = vlaneseq
        %v465 = vshrl.u32 %v464, 7
        %v466 = vsub.s32 0, %v465
        %v467 = vrot.slane %v462, %v466
        %vm469 = vcmask 261120
        %v471 = vsel %vm469, %v457, 0
        %473 = vmatprep.subr.mxu0 0.0
        %474 = vmatpush1.msra.mxu0 0.0
        %475 = vmatprep.subr.mxu0 0.0
        %476 = vmatpush1.msra.mxu0 0.0
        %477 = vmatprep.subr.mxu0 0.0
        %478 = vmatpush1.msra.mxu0 0.0
        %479 = vmatprep.subr.mxu0 0.0
        %480 = vmatpush1.msra.mxu0 0.0
        %481 = vmatprep.subr.mxu0 0.0
        %482 = vmatpush1.msra.mxu0 0.0
        %483 = vmatprep.subr.mxu0 0.0
        %484 = vmatpush1.msra.mxu0 0.0
        %485 = vmatprep.subr.mxu0 0.0
        %486 = vmatpush1.msra.mxu0 0.0
        %487 = vmatprep.subr.mxu0 0.0
        %488 = vmatpush1.msra.mxu0 0.0
        %489 = vmatprep.subr.mxu0 0.0
        %490 = vmatpush1.msra.mxu0 0.0
        %491 = vmatprep.subr.mxu0 0.0
        %492 = vmatpush1.msra.mxu0 0.0
        %493 = vmatprep.subr.mxu0 0.0
        %494 = vmatpush1.msra.mxu0 0.0
        %495 = vmatprep.subr.mxu0 0.0
        %496 = vmatpush1.msra.mxu0 0.0
        %497 = vmatprep.subr.mxu0 0.0
        %498 = vmatpush1.msra.mxu0 %v461
        %499 = vmatprep.subr.mxu0 0.0
        %500 = vmatpush1.msra.mxu0 %v460
        %501 = vmatprep.subr.mxu0 0.0
        %502 = vmatpush1.msra.mxu0 %v459
        %503 = vmatprep.subr.mxu0 0.0
        %504 = vmatpush1.msra.mxu0 %v458
        %505 = vmatprep.subr.mxu0 0.0
        %506 = vmatpush2.msra.mxu0 0.0
        %507 = vmatprep.subr.mxu0 0.0
        %508 = vmatpush2.msra.mxu0 0.0
        %509 = vmatprep.subr.mxu0 0.0
        %510 = vmatpush2.msra.mxu0 0.0
        %511 = vmatprep.subr.mxu0 0.0
        %512 = vmatpush2.msra.mxu0 0.0
        %513 = vmatprep.subr.mxu0 0.0
        %514 = vmatpush2.msra.mxu0 0.0
        %515 = vmatprep.subr.mxu0 0.0
        %516 = vmatpush2.msra.mxu0 0.0
        %517 = vmatprep.subr.mxu0 0.0
        %518 = vmatpush2.msra.mxu0 0.0
        %519 = vmatprep.subr.mxu0 0.0
        %520 = vmatpush2.msra.mxu0 0.0
        %521 = vmatprep.subr.mxu0 0.0
        %522 = vmatpush2.msra.mxu0 0.0
        %523 = vmatprep.subr.mxu0 0.0
        %524 = vmatpush2.msra.mxu0 0.0
        %525 = vmatprep.subr.mxu0 0.0
        %526 = vmatpush2.msra.mxu0 0.0
        %527 = vmatprep.subr.mxu0 0.0
        %528 = vmatpush2.msra.mxu0 0.0
        %529 = vmatprep.subr.mxu0 0.0
        %530 = vmatpush2.msra.mxu0 0.0
        %531 = vmatprep.subr.mxu0 0.0
        %532 = vmatpush2.msra.mxu0 0.0
        %533 = vmatprep.subr.mxu0 0.0
        %534 = vmatpush2.msra.mxu0 0.0
        %535 = vmatprep.subr.mxu0 0.0
        %536 = vmatpush2.msra.mxu0 0.0
        %537 = vmatprep.mubr.f32.mxu0 0.0
        %538 = vmatmul.mubr.f32.gmra.mxu0 %v471
        %v539 = vpop.f32.mrf.mxu0
        %v540 = vadd.f32 %v467, %v539
        %v541 = vpop.f32.mrf.mxu0
        %542 = vdwg.mxu0
        %v543 = vld [vmem:[%s4] sm:$0xff]
        %v544 = vld [vmem:[%s4 + $0x8] sm:$0xff]
        %v545 = vld [vmem:[%s4 + $0x10] sm:$0xff]
        %v546 = vld [vmem:[%s4 + $0x18] sm:$0xff]
        %v548 = vsel %vm469, %v540, 0
        %550 = vmatprep.subr.mxu0 0.0
        %551 = vmatpush1.msra.mxu0 0.0
        %552 = vmatprep.subr.mxu0 0.0
        %553 = vmatpush1.msra.mxu0 0.0
        %554 = vmatprep.subr.mxu0 0.0
        %555 = vmatpush1.msra.mxu0 0.0
        %556 = vmatprep.subr.mxu0 0.0
        %557 = vmatpush1.msra.mxu0 0.0
        %558 = vmatprep.subr.mxu0 0.0
        %559 = vmatpush1.msra.mxu0 0.0
        %560 = vmatprep.subr.mxu0 0.0
        %561 = vmatpush1.msra.mxu0 0.0
        %562 = vmatprep.subr.mxu0 0.0
        %563 = vmatpush1.msra.mxu0 0.0
        %564 = vmatprep.subr.mxu0 0.0
        %565 = vmatpush1.msra.mxu0 0.0
        %566 = vmatprep.subr.mxu0 0.0
        %567 = vmatpush1.msra.mxu0 0.0
        %568 = vmatprep.subr.mxu0 0.0
        %569 = vmatpush1.msra.mxu0 0.0
        %570 = vmatprep.subr.mxu0 0.0
        %571 = vmatpush1.msra.mxu0 0.0
        %572 = vmatprep.subr.mxu0 0.0
        %573 = vmatpush1.msra.mxu0 0.0
        %574 = vmatprep.subr.mxu0 0.0
        %575 = vmatpush1.msra.mxu0 %v546
        %576 = vmatprep.subr.mxu0 0.0
        %577 = vmatpush1.msra.mxu0 %v545
        %578 = vmatprep.subr.mxu0 0.0
        %579 = vmatpush1.msra.mxu0 %v544
        %580 = vmatprep.subr.mxu0 0.0
        %581 = vmatpush1.msra.mxu0 %v543
        %582 = vmatprep.subr.mxu0 0.0
        %583 = vmatpush2.msra.mxu0 0.0
        %584 = vmatprep.subr.mxu0 0.0
        %585 = vmatpush2.msra.mxu0 0.0
        %586 = vmatprep.subr.mxu0 0.0
        %587 = vmatpush2.msra.mxu0 0.0
        %588 = vmatprep.subr.mxu0 0.0
        %589 = vmatpush2.msra.mxu0 0.0
        %590 = vmatprep.subr.mxu0 0.0
        %591 = vmatpush2.msra.mxu0 0.0
        %592 = vmatprep.subr.mxu0 0.0
        %593 = vmatpush2.msra.mxu0 0.0
        %594 = vmatprep.subr.mxu0 0.0
        %595 = vmatpush2.msra.mxu0 0.0
        %596 = vmatprep.subr.mxu0 0.0
        %597 = vmatpush2.msra.mxu0 0.0
        %598 = vmatprep.subr.mxu0 0.0
        %599 = vmatpush2.msra.mxu0 0.0
        %600 = vmatprep.subr.mxu0 0.0
        %601 = vmatpush2.msra.mxu0 0.0
        %602 = vmatprep.subr.mxu0 0.0
        %603 = vmatpush2.msra.mxu0 0.0
        %604 = vmatprep.subr.mxu0 0.0
        %605 = vmatpush2.msra.mxu0 0.0
        %606 = vmatprep.subr.mxu0 0.0
        %607 = vmatpush2.msra.mxu0 0.0
        %608 = vmatprep.subr.mxu0 0.0
        %609 = vmatpush2.msra.mxu0 0.0
        %610 = vmatprep.subr.mxu0 0.0
        %611 = vmatpush2.msra.mxu0 0.0
        %612 = vmatprep.subr.mxu0 0.0
        %613 = vmatpush2.msra.mxu0 0.0
        %614 = vmatprep.mubr.f32.mxu0 0.0
        %615 = vmatmul.mubr.f32.gmra.mxu0 %v548
        %v616 = vpop.f32.mrf.mxu0
        %v617 = vadd.f32 0.0, %v616
        %v618 = vpop.f32.mrf.mxu0
        %619 = vdwg.mxu0
        %v620 = vld [vmem:[%s413] sm:$0xff]
        %v621 = vmul.f32 %v617, %v620
        %v622 = vsel %vm469, %v621, 0.0
        %623 = vadd.xlane.f32.xlu0 %v622
        %v624 = vpop.xlane.xlu0 %623
        %s625 = scalar_lea.vmem %s413, 8 [#allocation5]
        %v626 = vld [vmem:[%s625] sm:$0xff]
        %v627 = vmul.f32 %v617, %v626
        %v628 = vsel %vm469, %v627, 0.0
        %629 = vadd.xlane.f32.xlu0 %v628
        %v630 = vpop.xlane.xlu0 %629
        %s631 = scalar_lea.vmem %s413, 16 [#allocation5]
        %v632 = vld [vmem:[%s631] sm:$0xff]
        %v633 = vmul.f32 %v617, %v632
        %v634 = vsel %vm469, %v633, 0.0
        %635 = vadd.xlane.f32.xlu0 %v634
        %v636 = vpop.xlane.xlu0 %635
        %s637 = scalar_lea.vmem %s413, 24 [#allocation5]
        %v638 = vld [vmem:[%s637] sm:$0xff]
        %v639 = vmul.f32 %v617, %v638
        %v640 = vsel %vm469, %v639, 0.0
        %641 = vadd.xlane.f32.xlu0 %v640
        %v642 = vpop.xlane.xlu0 %641
        %vm643 = vcmask 7168
        %v644 = vsel %vm643, %v624, -inf
        %v645 = vsel %vm643, %v630, -inf
        %v646 = vsel %vm643, %v636, -inf
        %v647 = vsel %vm643, %v642, -inf
        %v648 = vmax.f32 %v644, %v645
        %v649 = vmax.f32 %v646, %v647
        %v650 = vmax.f32 %v648, %v649
        %v651 = vsub.f32 %v624, %v650
        %v652 = vsub.f32 %v630, %v650
        %v653 = vsub.f32 %v636, %v650
        %v654 = vsub.f32 %v642, %v650
        %v655 = vmul.f32 %v651, 1.442695
        %v656 = vpow.pop %v655
        %v657 = vmul.f32 %v652, 1.442695
        %v658 = vpow.pop %v657
        %v659 = vmul.f32 %v653, 1.442695
        %v660 = vpow.pop %v659
        %v661 = vmul.f32 %v654, 1.442695
        %v662 = vpow.pop %v661
        %v663 = vsel %vm643, %v656, 0.0
        %v664 = vsel %vm643, %v658, 0.0
        %v665 = vadd.f32 %v663, %v664
        %v666 = vsel %vm643, %v660, 0.0
        %v667 = vadd.f32 %v665, %v666
        %v668 = vsel %vm643, %v662, 0.0
        %v669 = vadd.f32 %v667, %v668
        %v670 = vrcp.pop %v669
        %672 = vset.pattern.permute.xlu0 0
        %673 = vperm.xlu0 %672, %v656
        %v674 = vpop.permute.xlu0 %673
        %v676 = vmul.f32 %v674, %v620
        %678 = vset.pattern.permute.xlu0 0
        %679 = vperm.xlu0 %678, %v658
        %v680 = vpop.permute.xlu0 %679
        %v682 = vmul.f32 %v680, %v626
        %v683 = vadd.f32 %v676, %v682
        %685 = vset.pattern.permute.xlu0 0
        %686 = vperm.xlu0 %685, %v660
        %v687 = vpop.permute.xlu0 %686
        %v689 = vmul.f32 %v687, %v632
        %v690 = vadd.f32 %v683, %v689
        %692 = vset.pattern.permute.xlu0 0
        %693 = vperm.xlu0 %692, %v662
        %v694 = vpop.permute.xlu0 %693
        %v696 = vmul.f32 %v694, %v638
        %v697 = vadd.f32 %v690, %v696
        %699 = vset.pattern.permute.xlu0 0
        %700 = vperm.xlu0 %699, %v670
        %v701 = vpop.permute.xlu0 %700
        %v703 = vmul.f32 %v697, %v701
        %v704 = vadd.f32 %v703, %v457
        %v705 = vld [vmem:[%s5] sm:$0xff]
        %v706 = vld [vmem:[%s5 + $0x8] sm:$0xff]
        %v707 = vld [vmem:[%s5 + $0x10] sm:$0xff]
        %v708 = vld [vmem:[%s5 + $0x18] sm:$0xff]
        %v710 = vsel %vm469, %v704, 0
        %712 = vmatprep.subr.mxu0 0.0
        %713 = vmatpush1.msra.mxu0 0.0
        %714 = vmatprep.subr.mxu0 0.0
        %715 = vmatpush1.msra.mxu0 0.0
        %716 = vmatprep.subr.mxu0 0.0
        %717 = vmatpush1.msra.mxu0 0.0
        %718 = vmatprep.subr.mxu0 0.0
        %719 = vmatpush1.msra.mxu0 0.0
        %720 = vmatprep.subr.mxu0 0.0
        %721 = vmatpush1.msra.mxu0 0.0
        %722 = vmatprep.subr.mxu0 0.0
        %723 = vmatpush1.msra.mxu0 0.0
        %724 = vmatprep.subr.mxu0 0.0
        %725 = vmatpush1.msra.mxu0 0.0
        %726 = vmatprep.subr.mxu0 0.0
        %727 = vmatpush1.msra.mxu0 0.0
        %728 = vmatprep.subr.mxu0 0.0
        %729 = vmatpush1.msra.mxu0 0.0
        %730 = vmatprep.subr.mxu0 0.0
        %731 = vmatpush1.msra.mxu0 0.0
        %732 = vmatprep.subr.mxu0 0.0
        %733 = vmatpush1.msra.mxu0 0.0
        %734 = vmatprep.subr.mxu0 0.0
        %735 = vmatpush1.msra.mxu0 0.0
        %736 = vmatprep.subr.mxu0 0.0
        %737 = vmatpush1.msra.mxu0 %v708
        %738 = vmatprep.subr.mxu0 0.0
        %739 = vmatpush1.msra.mxu0 %v707
        %740 = vmatprep.subr.mxu0 0.0
        %741 = vmatpush1.msra.mxu0 %v706
        %742 = vmatprep.subr.mxu0 0.0
        %743 = vmatpush1.msra.mxu0 %v705
        %744 = vmatprep.subr.mxu0 0.0
        %745 = vmatpush2.msra.mxu0 0.0
        %746 = vmatprep.subr.mxu0 0.0
        %747 = vmatpush2.msra.mxu0 0.0
        %748 = vmatprep.subr.mxu0 0.0
        %749 = vmatpush2.msra.mxu0 0.0
        %750 = vmatprep.subr.mxu0 0.0
        %751 = vmatpush2.msra.mxu0 0.0
        %752 = vmatprep.subr.mxu0 0.0
        %753 = vmatpush2.msra.mxu0 0.0
        %754 = vmatprep.subr.mxu0 0.0
        %755 = vmatpush2.msra.mxu0 0.0
        %756 = vmatprep.subr.mxu0 0.0
        %757 = vmatpush2.msra.mxu0 0.0
        %758 = vmatprep.subr.mxu0 0.0
        %759 = vmatpush2.msra.mxu0 0.0
        %760 = vmatprep.subr.mxu0 0.0
        %761 = vmatpush2.msra.mxu0 0.0
        %762 = vmatprep.subr.mxu0 0.0
        %763 = vmatpush2.msra.mxu0 0.0
        %764 = vmatprep.subr.mxu0 0.0
        %765 = vmatpush2.msra.mxu0 0.0
        %766 = vmatprep.subr.mxu0 0.0
        %767 = vmatpush2.msra.mxu0 0.0
        %768 = vmatprep.subr.mxu0 0.0
        %769 = vmatpush2.msra.mxu0 0.0
        %770 = vmatprep.subr.mxu0 0.0
        %771 = vmatpush2.msra.mxu0 0.0
        %772 = vmatprep.subr.mxu0 0.0
        %773 = vmatpush2.msra.mxu0 0.0
        %774 = vmatprep.subr.mxu0 0.0
        %775 = vmatpush2.msra.mxu0 0.0
        %776 = vmatprep.mubr.f32.mxu0 0.0
        %777 = vmatmul.mubr.f32.gmra.mxu0 %v710
        %v778 = vpop.f32.mrf.mxu0
        %v779 = vadd.f32 0.0, %v778
        %v780 = vpop.f32.mrf.mxu0
        %781 = vdwg.mxu0
        %v782 = vld [vmem:[#allocation6] sm:$0xff]
        %v783 = vld [vmem:[#allocation6 + $0x8] sm:$0xff]
        %v784 = vld [vmem:[#allocation6 + $0x10] sm:$0xff]
        %v785 = vld [vmem:[#allocation6 + $0x18] sm:$0xff]
        %v786 = vld [vmem:[%s7] sm:$0x1]
        %v788 = vlaneseq
        %v789 = vshrl.u32 %v788, 7
        %v790 = vsub.s32 0, %v789
        %v791 = vrot.slane %v786, %v790
        %v794 = vsel %vm469, %v779, 0
        %796 = vmatprep.subr.mxu0 0.0
        %797 = vmatpush1.msra.mxu0 0.0
        %798 = vmatprep.subr.mxu0 0.0
        %799 = vmatpush1.msra.mxu0 0.0
        %800 = vmatprep.subr.mxu0 0.0
        %801 = vmatpush1.msra.mxu0 0.0
        %802 = vmatprep.subr.mxu0 0.0
        %803 = vmatpush1.msra.mxu0 0.0
        %804 = vmatprep.subr.mxu0 0.0
        %805 = vmatpush1.msra.mxu0 0.0
        %806 = vmatprep.subr.mxu0 0.0
        %807 = vmatpush1.msra.mxu0 0.0
        %808 = vmatprep.subr.mxu0 0.0
        %809 = vmatpush1.msra.mxu0 0.0
        %810 = vmatprep.subr.mxu0 0.0
        %811 = vmatpush1.msra.mxu0 0.0
        %812 = vmatprep.subr.mxu0 0.0
        %813 = vmatpush1.msra.mxu0 0.0
        %814 = vmatprep.subr.mxu0 0.0
        %815 = vmatpush1.msra.mxu0 0.0
        %816 = vmatprep.subr.mxu0 0.0
        %817 = vmatpush1.msra.mxu0 0.0
        %818 = vmatprep.subr.mxu0 0.0
        %819 = vmatpush1.msra.mxu0 0.0
        %820 = vmatprep.subr.mxu0 0.0
        %821 = vmatpush1.msra.mxu0 %v785
        %822 = vmatprep.subr.mxu0 0.0
        %823 = vmatpush1.msra.mxu0 %v784
        %824 = vmatprep.subr.mxu0 0.0
        %825 = vmatpush1.msra.mxu0 %v783
        %826 = vmatprep.subr.mxu0 0.0
        %827 = vmatpush1.msra.mxu0 %v782
        %828 = vmatprep.subr.mxu0 0.0
        %829 = vmatpush2.msra.mxu0 0.0
        %830 = vmatprep.subr.mxu0 0.0
        %831 = vmatpush2.msra.mxu0 0.0
        %832 = vmatprep.subr.mxu0 0.0
        %833 = vmatpush2.msra.mxu0 0.0
        %834 = vmatprep.subr.mxu0 0.0
        %835 = vmatpush2.msra.mxu0 0.0
        %836 = vmatprep.subr.mxu0 0.0
        %837 = vmatpush2.msra.mxu0 0.0
        %838 = vmatprep.subr.mxu0 0.0
        %839 = vmatpush2.msra.mxu0 0.0
        %840 = vmatprep.subr.mxu0 0.0
        %841 = vmatpush2.msra.mxu0 0.0
        %842 = vmatprep.subr.mxu0 0.0
        %843 = vmatpush2.msra.mxu0 0.0
        %844 = vmatprep.subr.mxu0 0.0
        %845 = vmatpush2.msra.mxu0 0.0
        %846 = vmatprep.subr.mxu0 0.0
        %847 = vmatpush2.msra.mxu0 0.0
        %848 = vmatprep.subr.mxu0 0.0
        %849 = vmatpush2.msra.mxu0 0.0
        %850 = vmatprep.subr.mxu0 0.0
        %851 = vmatpush2.msra.mxu0 0.0
        %852 = vmatprep.subr.mxu0 0.0
        %853 = vmatpush2.msra.mxu0 0.0
        %854 = vmatprep.subr.mxu0 0.0
        %855 = vmatpush2.msra.mxu0 0.0
        %856 = vmatprep.subr.mxu0 0.0
        %857 = vmatpush2.msra.mxu0 0.0
        %858 = vmatprep.subr.mxu0 0.0
        %859 = vmatpush2.msra.mxu0 0.0
        %860 = vmatprep.mubr.f32.mxu0 0.0
        %861 = vmatmul.mubr.f32.gmra.mxu0 %v794
        %v862 = vpop.f32.mrf.mxu0
        %v863 = vadd.f32 %v791, %v862
        %v864 = vpop.f32.mrf.mxu0
        %865 = vdwg.mxu0
        %v866 = vmul.f32 %v863, 0.5
        %v867 = vmul.f32 %v863, 0.70710677
        %v868 = verf.f32.pop %v867
        %v869 = vadd.f32 %v868, 1.0
        %v870 = vmul.f32 %v866, %v869
        %v871 = vld [vmem:[%s8] sm:$0xff]
        %v872 = vld [vmem:[%s8 + $0x8] sm:$0xff]
        %v873 = vld [vmem:[%s8 + $0x10] sm:$0xff]
        %v874 = vld [vmem:[%s8 + $0x18] sm:$0xff]
        %v875 = vld [vmem:[%s8 + $0x20] sm:$0xff]
        %v876 = vld [vmem:[%s8 + $0x28] sm:$0xff]
        %v877 = vld [vmem:[%s8 + $0x30] sm:$0xff]
        %v878 = vld [vmem:[%s8 + $0x38] sm:$0xff]
        %v879 = vld [vmem:[%s8 + $0x40] sm:$0xff]
        %v880 = vld [vmem:[%s8 + $0x48] sm:$0xff]
        %v881 = vld [vmem:[%s8 + $0x50] sm:$0xff]
        %v882 = vld [vmem:[%s8 + $0x58] sm:$0xff]
        %v883 = vld [vmem:[%s8 + $0x60] sm:$0xff]
        %v884 = vld [vmem:[%s8 + $0x68] sm:$0xff]
        %v885 = vld [vmem:[%s8 + $0x70] sm:$0xff]
        %v886 = vld [vmem:[%s8 + $0x78] sm:$0xff]
        %v887 = vld [vmem:[%s9] sm:$0x1]
        %v889 = vlaneseq
        %v890 = vshrl.u32 %v889, 7
        %v891 = vsub.s32 0, %v890
        %v892 = vrot.slane %v887, %v891
        %894 = vmatprep.subr.mxu0 0.0
        %895 = vmatpush1.msra.mxu0 %v886
        %896 = vmatprep.subr.mxu0 0.0
        %897 = vmatpush1.msra.mxu0 %v885
        %898 = vmatprep.subr.mxu0 0.0
        %899 = vmatpush1.msra.mxu0 %v884
        %900 = vmatprep.subr.mxu0 0.0
        %901 = vmatpush1.msra.mxu0 %v883
        %902 = vmatprep.subr.mxu0 0.0
        %903 = vmatpush1.msra.mxu0 %v882
        %904 = vmatprep.subr.mxu0 0.0
        %905 = vmatpush1.msra.mxu0 %v881
        %906 = vmatprep.subr.mxu0 0.0
        %907 = vmatpush1.msra.mxu0 %v880
        %908 = vmatprep.subr.mxu0 0.0
        %909 = vmatpush1.msra.mxu0 %v879
        %910 = vmatprep.subr.mxu0 0.0
        %911 = vmatpush1.msra.mxu0 %v878
        %912 = vmatprep.subr.mxu0 0.0
        %913 = vmatpush1.msra.mxu0 %v877
        %914 = vmatprep.subr.mxu0 0.0
        %915 = vmatpush1.msra.mxu0 %v876
        %916 = vmatprep.subr.mxu0 0.0
        %917 = vmatpush1.msra.mxu0 %v875
        %918 = vmatprep.subr.mxu0 0.0
        %919 = vmatpush1.msra.mxu0 %v874
        %920 = vmatprep.subr.mxu0 0.0
        %921 = vmatpush1.msra.mxu0 %v873
        %922 = vmatprep.subr.mxu0 0.0
        %923 = vmatpush1.msra.mxu0 %v872
        %924 = vmatprep.subr.mxu0 0.0
        %925 = vmatpush1.msra.mxu0 %v871
        %926 = vmatprep.subr.mxu0 0.0
        %927 = vmatpush2.msra.mxu0 0.0
        %928 = vmatprep.subr.mxu0 0.0
        %929 = vmatpush2.msra.mxu0 0.0
        %930 = vmatprep.subr.mxu0 0.0
        %931 = vmatpush2.msra.mxu0 0.0
        %932 = vmatprep.subr.mxu0 0.0
        %933 = vmatpush2.msra.mxu0 0.0
        %934 = vmatprep.subr.mxu0 0.0
        %935 = vmatpush2.msra.mxu0 0.0
        %936 = vmatprep.subr.mxu0 0.0
        %937 = vmatpush2.msra.mxu0 0.0
        %938 = vmatprep.subr.mxu0 0.0
        %939 = vmatpush2.msra.mxu0 0.0
        %940 = vmatprep.subr.mxu0 0.0
        %941 = vmatpush2.msra.mxu0 0.0
        %942 = vmatprep.subr.mxu0 0.0
        %943 = vmatpush2.msra.mxu0 0.0
        %944 = vmatprep.subr.mxu0 0.0
        %945 = vmatpush2.msra.mxu0 0.0
        %946 = vmatprep.subr.mxu0 0.0
        %947 = vmatpush2.msra.mxu0 0.0
        %948 = vmatprep.subr.mxu0 0.0
        %949 = vmatpush2.msra.mxu0 0.0
        %950 = vmatprep.subr.mxu0 0.0
        %951 = vmatpush2.msra.mxu0 0.0
        %952 = vmatprep.subr.mxu0 0.0
        %953 = vmatpush2.msra.mxu0 0.0
        %954 = vmatprep.subr.mxu0 0.0
        %955 = vmatpush2.msra.mxu0 0.0
        %956 = vmatprep.subr.mxu0 0.0
        %957 = vmatpush2.msra.mxu0 0.0
        %958 = vmatprep.mubr.f32.mxu0 0.0
        %959 = vmatmul.mubr.f32.gmra.mxu0 %v870
        %v960 = vpop.f32.mrf.mxu0
        %v961 = vadd.f32 %v892, %v960
        %v962 = vpop.f32.mrf.mxu0
        %963 = vdwg.mxu0
        %964 = vst.msk [vmem:[%s456] sm:$0xff] %vm469, %v961
        %s965 = sand.u32 %s256, 1
        %s966 = scalar_lea.sflag [#allocation4], %s965
        %s967 = sand.u32 %s256, 1
        %s968 = smul.addr %s967, 8
        %s969 = scalar_lea.vmem [#allocation8], %s968
        // Predicated region
        $region107: #{tpu_custom_call.1} parent=93 // pred_check
          %p970 = pneg %p266
        $region108: #{tpu_custom_call.1} parent=93 // pred_check_branch
          %972 = sbr.rel (%p970) target = $region110
        $region109: #{tpu_custom_call.1} parent=93 // pred_region
          %s974 = ssub.s32 128, 128
          %975 = vsyncadd %s966, %s974
          %s976 = smul.addr %s28, 128
          %s977 = scalar_lea.hbm %s10, %s976
          %s979 = sshll.u32 %s969, 4
          %s980 = int_to_ptr.vmem [resolvable:$true] %s979
          %982 = dma.vmem_to_hbm [thread:$0]  %s980, 128, %s977, %s966
        $region110: #{tpu_custom_call.1} parent=93 // pred_fallthru
          _
      $region94: #{tpu_custom_call.1} parent=5 // pred_fallthru
        _
      %p983 = scmp.le.s32.totalorder 2, %s23
      // Predicated region
      $region111: #{tpu_custom_call.1} parent=5 // pred_check
        %p984 = pneg %p983
      $region112: #{tpu_custom_call.1} parent=5 // pred_check_branch
        %986 = sbr.rel (%p984) target = $region114
      $region113: #{tpu_custom_call.1} parent=5 // pred_region
        %s987 = ssub.s32 %s23, 2
        // Predicated region
        $region115: #{tpu_custom_call.1} parent=113 // pred_check
          %p988 = pneg %p272
        $region116: #{tpu_custom_call.1} parent=113 // pred_check_branch
          %990 = sbr.rel (%p988) target = $region118
        $region117: #{tpu_custom_call.1} parent=113 // pred_region
          %s991 = sand.u32 %s257, 1
          %s992 = scalar_lea.sflag [#allocation4], %s991
          %s993 = sand.u32 %s257, 1
          %s994 = smul.addr %s993, 8
          %s995 = scalar_lea.vmem [#allocation8], %s994
          %996 = dma.done %s992, 128
        $region118: #{tpu_custom_call.1} parent=113 // pred_fallthru
          _
      $region114: #{tpu_custom_call.1} parent=5 // pred_fallthru
        _
    $region6: #{tpu_custom_call.1} parent=1 // loop_footer
      %s27 = sadd.s32 1, %s23
    $region7: #{tpu_custom_call.1} parent=1 // loop_footer_branch
      %22 = sbr.rel target = $region3
    $region8: #{tpu_custom_call.1} parent=1 // loop_exit
      _
    %997 = vsyncpa [#allocation3], 1
    %s998 = scalar_lea.sflag [#allocation3], 1
    %999 = vsyncpa %s998, 1
    %1000 = vsyncpa [#allocation7], 1
    %1001 = vsyncpa [#allocation4], 1
    %s1002 = scalar_lea.sflag [#allocation4], 1
    %1003 = vsyncpa %s1002, 1

</llo_original>
